<compile_context>
chip_gen: v5e
topology: v5e:2x2
jax: 0.10.0
libtpu: 0.0.40
codegen_flags: <defaults>
</compile_context>

<pallas_src>
import jax
import jax.numpy as jnp
from jax.experimental import pallas as pl
from jax.experimental.pallas import tpu as pltpu


def _sve_kernel(x_ref,
                w1_ref, b1_ref, w2_ref, b2_ref, w3_ref, b3_ref, wa_ref, ba_ref,
                wc1_ref, bc1_ref, wc2_ref, bc2_ref, wc3_ref, bc3_ref,
                wq_ref, bq_ref,
                out_ref):
    f32, bf16 = jnp.float32, jnp.bfloat16

    xb = x_ref[...].astype(bf16)                                  # (tb, d_pad)

    # ---------------- actor: relu(fc1) -> relu(fc2) -> relu(fc3) -> tanh(out) ---
    h = jnp.maximum(
        jnp.dot(xb, w1_ref[...], preferred_element_type=f32) + b1_ref[...], 0.0)
    h = jnp.maximum(
        jnp.dot(h.astype(bf16), w2_ref[...], preferred_element_type=f32)
        + b2_ref[...], 0.0)
    h = jnp.maximum(
        jnp.dot(h.astype(bf16), w3_ref[...], preferred_element_type=f32)
        + b3_ref[...], 0.0)
    # action = max_action * tanh(z); the critic uses action / max_action == tanh(z),
    # so max_action never enters the kernel.  action_out is padded to a_pad (=128)
    # output lanes with zero cols/bias, so padded lanes are tanh(0) = 0 and `a`
    # concatenates straight into the fused critic-fc1 operand.
    a = jnp.tanh(
        jnp.dot(h.astype(bf16), wa_ref[...], preferred_element_type=f32)
        + ba_ref[...])                                            # (tb, a_pad)

    # ---------------- critic: fc1 fused into a single matmul -------------------
    # wc1 rows [0:d_pad] act on x_pad (goal block pre-summed for the duplicated
    # x[..., -goal:]); rows [d_pad:d_pad+a_pad] act on the padded action.
    xa = jnp.concatenate([xb, a.astype(bf16)], axis=-1)           # (tb, d_pad+a_pad)
    hc = jnp.maximum(
        jnp.dot(xa, wc1_ref[...], preferred_element_type=f32) + bc1_ref[...], 0.0)
    hc = jnp.maximum(
        jnp.dot(hc.astype(bf16), wc2_ref[...], preferred_element_type=f32)
        + bc2_ref[...], 0.0)
    hc = jnp.maximum(
        jnp.dot(hc.astype(bf16), wc3_ref[...], preferred_element_type=f32)
        + bc3_ref[...], 0.0)

    # ---------------- q_out (N=1): VPU multiply + lane reduction ----------------
    q = jnp.sum(hc * wq_ref[...], axis=-1, keepdims=True) + bq_ref[...]  # (tb, 1)
    # Lane-dense store: broadcast the q column across 128 lanes (unmasked vst,
    # dense writeback rows); the wrapper reads column 0.
    out_ref[...] = jnp.broadcast_to(q, out_ref.shape)


def _round_up(n, m):
    return ((n + m - 1) // m) * m


def _linear_params(key, fan_in, fan_out):
    """PyTorch-style Linear init: U(-1/sqrt(fan_in), 1/sqrt(fan_in)), (in,out) layout."""
    bound = 1.0 / (fan_in ** 0.5)
    kw, kb = jax.random.split(key)
    w = jax.random.uniform(kw, (fan_in, fan_out), jnp.float32, -bound, bound)
    b = jax.random.uniform(kb, (1, fan_out), jnp.float32, -bound, bound)
    return w, b


def init_params(key, obs_dim, goal_dim, act_dim, hidden=256):
    keys = jax.random.split(key, 8)
    d_in = obs_dim + goal_dim
    d_pad = _round_up(d_in, 128)          # padded obs+goal width (K of actor fc1)
    a_pad = _round_up(act_dim, 128)       # padded action width (N of action_out)

    # actor
    w1, b1 = _linear_params(keys[0], d_in, hidden)
    w2, b2 = _linear_params(keys[1], hidden, hidden)
    w3, b3 = _linear_params(keys[2], hidden, hidden)
    wa, ba = _linear_params(keys[3], hidden, act_dim)
    # critic: input is cat([o, g, x[...,-goal:]==g, action/max_action])
    c_in = obs_dim + 2 * goal_dim + act_dim
    wc1, bc1 = _linear_params(keys[4], c_in, hidden)
    wc2, bc2 = _linear_params(keys[5], hidden, hidden)
    wc3, bc3 = _linear_params(keys[6], hidden, hidden)
    wq, bq = _linear_params(keys[7], hidden, 1)

    # actor fc1: zero-pad the K dim (obs+goal -> d_pad) to match the padded x.
    w1p = jnp.zeros((d_pad, hidden), jnp.float32).at[:d_in].set(w1)
    # action_out: zero-pad the N dim (act -> a_pad); padded lanes give tanh(0)=0.
    wap = jnp.zeros((hidden, a_pad), jnp.float32).at[:, :act_dim].set(wa)
    bap = jnp.zeros((1, a_pad), jnp.float32).at[:, :act_dim].set(ba)
    # Critic fc1, fused + padded: pre-sum the two goal blocks (both multiply g),
    # then lay x-rows in [0:d_pad) and action-rows in [d_pad:d_pad+act_dim).
    wc1x = wc1[:d_in].at[obs_dim:d_in].add(wc1[d_in:obs_dim + 2 * goal_dim])
    wc1a = wc1[obs_dim + 2 * goal_dim:]
    wc1f = (jnp.zeros((d_pad + a_pad, hidden), jnp.float32)
            .at[:d_in].set(wc1x)
            .at[d_pad:d_pad + act_dim].set(wc1a))
    # q_out as a (1, hidden) f32 row for the in-kernel VPU multiply + reduction.
    wq_row = wq.T

    bf16 = jnp.bfloat16
    w1p, w2, w3, wap, wc1f, wc2, wc3 = [
        w.astype(bf16) for w in (w1p, w2, w3, wap, wc1f, wc2, wc3)]
    return (w1p, b1, w2, b2, w3, b3, wap, bap,
            wc1f, bc1, wc2, bc2, wc3, bc3, wq_row, bq)


def state_value_estimator(o, g, params, max_action=1.0, norm=False,
                          o_stats=None, g_stats=None, tile_b=512):
    """Pallas implementation of StateValueEstimator.forward.

    Accepts a single (obs,), (goal,) pair (returns a scalar, like the PyTorch
    module) or batched (B, obs), (B, goal) inputs (returns (B,) values).
    `max_action` cancels out of the forward pass (critic uses action/max_action).
    """
    del max_action  # action * max_a then / max_a cancels exactly
    o = jnp.asarray(o, jnp.float32)
    g = jnp.asarray(g, jnp.float32)
    single = (o.ndim == 1)
    if single:
        o, g = o[None, :], g[None, :]
    if norm:
        # TODO(synk): real HER normalizer clips (clip_obs/clip_range) before and
        # after normalization; plain (x - mean) / std is used here as glue.
        o = (o - o_stats[0]) / o_stats[1]
        g = (g - g_stats[0]) / g_stats[1]

    x = jnp.concatenate([o, g], axis=-1)          # torch.cat([o, g]) (+ batching)
    batch, d_in = x.shape
    d_pad = params[0].shape[0]                    # w1p: (d_pad, hidden)
    hidden = params[2].shape[0]                   # w2: (hidden, hidden)
    a_pad = params[6].shape[1]                    # wap: (hidden, a_pad)

    # Batch tiling: one tile for small batches; otherwise multiple-of-128 tiles
    # split as evenly as possible (>= 2 grid steps so both v7x TensorCores work).
    tile_b = int(tile_b)
    b8 = _round_up(batch, 8)
    if b8 <= tile_b:
        tb = b8
    else:
        n_tiles = -(-b8 // tile_b)
        tb = _round_up(-(-b8 // n_tiles), 128)
    padded_b = _round_up(b8, tb)
    if padded_b != batch or d_pad != d_in:
        x = jnp.pad(x, ((0, padded_b - batch), (0, d_pad - d_in)))
    grid = (padded_b // tb,)

    in_specs = [pl.BlockSpec((tb, d_pad), lambda i: (i, 0))]
    # Weights/biases: constant index_map -> DMA'd once, resident in VMEM (~0.6 MiB).
    in_specs += [pl.BlockSpec(p.shape, lambda i: (0, 0)) for p in params]
    out_specs = pl.BlockSpec((tb, 128), lambda i: (i, 0))

    flops_per_row = 2 * (d_pad * hidden              # actor fc1
                         + 2 * hidden * hidden       # actor fc2, fc3
                         + hidden * a_pad            # action_out (padded)
                         + (d_pad + a_pad) * hidden  # critic fc1 (fused)
                         + 2 * hidden * hidden       # critic fc2, fc3
                         + hidden)                   # q_out reduction
    weight_bytes = sum(int(p.size) * jnp.dtype(p.dtype).itemsize for p in params)
    cost = pl.CostEstimate(
        flops=int(flops_per_row) * int(padded_b),
        transcendentals=int(padded_b) * int(a_pad),
        bytes_accessed=int(weight_bytes + x.size * 4 + padded_b * 128 * 4),
    )

    out = pl.pallas_call(
        _sve_kernel,
        out_shape=jax.ShapeDtypeStruct((padded_b, 128), jnp.float32),
        grid=grid,
        in_specs=in_specs,
        out_specs=out_specs,
        compiler_params=pltpu.CompilerParams(
            dimension_semantics=("parallel",),
            # Headroom for large tile_b overrides on v5e (16 MiB scoped default);
            # no-op on v6e/v7x (already 32 MiB).
            vmem_limit_bytes=32 * 1024 * 1024,
        ),
        cost_estimate=cost,
    )(x, *params)

    q = out[:batch, 0]
    return q[0] if single else q


def _reference_forward(o, g, params):
    """Pure-jnp mirror of the kernel math (fused params), for validation."""
    (w1, b1, w2, b2, w3, b3, wa, ba,
     wc1, bc1, wc2, bc2, wc3, bc3, wq, bq) = params
    bf16, f32 = jnp.bfloat16, jnp.float32

    def mm(h, w, b):
        return jnp.dot(h.astype(bf16), w, preferred_element_type=f32) + b

    x = jnp.concatenate([o, g], axis=-1)
    x = jnp.pad(x, ((0, 0), (0, w1.shape[0] - x.shape[1])))
    h = jnp.maximum(mm(x, w1, b1), 0.0)
    h = jnp.maximum(mm(h, w2, b2), 0.0)
    h = jnp.maximum(mm(h, w3, b3), 0.0)
    a = jnp.tanh(mm(h, wa, ba))
    xa = jnp.concatenate([x, a], axis=-1)
    hc = jnp.maximum(mm(xa, wc1, bc1), 0.0)
    hc = jnp.maximum(mm(hc, wc2, bc2), 0.0)
    hc = jnp.maximum(mm(hc, wc3, bc3), 0.0)
    return jnp.sum(hc * wq.astype(f32), axis=-1) + bq[0, 0]


if __name__ == "__main__":
    # env_params (small, HER-style)
    obs_dim, goal_dim, act_dim = 10, 5, 4
    max_action = 1.0

    key = jax.random.PRNGKey(0)
    k_param, k_o, k_g = jax.random.split(key, 3)
    params = init_params(k_param, obs_dim, goal_dim, act_dim)

    # Batched evaluation (main throughput path)
    batch = 6
    o_batch = jax.random.normal(k_o, (batch, obs_dim), jnp.float32)
    g_batch = jax.random.normal(k_g, (batch, goal_dim), jnp.float32)
    values = state_value_estimator(o_batch, g_batch, params, max_action, norm=False)
    jax.block_until_ready(values)
    assert values.shape == (batch,) and values.dtype == jnp.float32

    # Validate against a pure-jnp reference of the same (fused) math.
    ref = _reference_forward(o_batch, g_batch, params)
    assert jnp.allclose(values, ref, atol=2e-2, rtol=2e-2), (values, ref)

    # Single (o, g) pair, matching PyTorch forward(o, g) -> scalar
    v1 = state_value_estimator(o_batch[0], g_batch[0], params, max_action, norm=False)
    jax.block_until_ready(v1)
    assert v1.shape == () and v1.dtype == jnp.float32

    print("KERNEL_OK")
</pallas_src>

<mosaic_0001>
module attributes {stable_mosaic.version = 11 : i64} {
  func.func @_sve_kernel(%arg0: i32, %arg1: memref<8x128xf32, #tpu.memory_space<vmem>>, %arg2: memref<128x256xbf16, #tpu.memory_space<vmem>>, %arg3: memref<1x256xf32, #tpu.memory_space<vmem>>, %arg4: memref<256x256xbf16, #tpu.memory_space<vmem>>, %arg5: memref<1x256xf32, #tpu.memory_space<vmem>>, %arg6: memref<256x256xbf16, #tpu.memory_space<vmem>>, %arg7: memref<1x256xf32, #tpu.memory_space<vmem>>, %arg8: memref<256x128xbf16, #tpu.memory_space<vmem>>, %arg9: memref<1x128xf32, #tpu.memory_space<vmem>>, %arg10: memref<256x256xbf16, #tpu.memory_space<vmem>>, %arg11: memref<1x256xf32, #tpu.memory_space<vmem>>, %arg12: memref<256x256xbf16, #tpu.memory_space<vmem>>, %arg13: memref<1x256xf32, #tpu.memory_space<vmem>>, %arg14: memref<256x256xbf16, #tpu.memory_space<vmem>>, %arg15: memref<1x256xf32, #tpu.memory_space<vmem>>, %arg16: memref<1x256xf32, #tpu.memory_space<vmem>>, %arg17: memref<1x1xf32, #tpu.memory_space<vmem>>, %arg18: memref<8x128xf32, #tpu.memory_space<vmem>>) attributes {dimension_semantics = [#tpu.dimension_semantics<parallel>], iteration_bounds = array<i64: 1>, scalar_prefetch = 0 : i64, scratch_operands = 0 : i64, tpu.core_type = #tpu.core_type<tc>, window_params = [{transform_indices = @transform_0, window_bounds = array<i64: 8, 128>}, {pipeline_mode = #tpu.pipeline_mode<synchronous>, transform_indices = @transform_1, window_bounds = array<i64: 128, 256>}, {pipeline_mode = #tpu.pipeline_mode<synchronous>, transform_indices = @transform_2, window_bounds = array<i64: 1, 256>}, {pipeline_mode = #tpu.pipeline_mode<synchronous>, transform_indices = @transform_3, window_bounds = array<i64: 256, 256>}, {pipeline_mode = #tpu.pipeline_mode<synchronous>, transform_indices = @transform_4, window_bounds = array<i64: 1, 256>}, {pipeline_mode = #tpu.pipeline_mode<synchronous>, transform_indices = @transform_5, window_bounds = array<i64: 256, 256>}, {pipeline_mode = #tpu.pipeline_mode<synchronous>, transform_indices = @transform_6, window_bounds = array<i64: 1, 256>}, {pipeline_mode = #tpu.pipeline_mode<synchronous>, transform_indices = @transform_7, window_bounds = array<i64: 256, 128>}, {pipeline_mode = #tpu.pipeline_mode<synchronous>, transform_indices = @transform_8, window_bounds = array<i64: 1, 128>}, {pipeline_mode = #tpu.pipeline_mode<synchronous>, transform_indices = @transform_9, window_bounds = array<i64: 256, 256>}, {pipeline_mode = #tpu.pipeline_mode<synchronous>, transform_indices = @transform_10, window_bounds = array<i64: 1, 256>}, {pipeline_mode = #tpu.pipeline_mode<synchronous>, transform_indices = @transform_11, window_bounds = array<i64: 256, 256>}, {pipeline_mode = #tpu.pipeline_mode<synchronous>, transform_indices = @transform_12, window_bounds = array<i64: 1, 256>}, {pipeline_mode = #tpu.pipeline_mode<synchronous>, transform_indices = @transform_13, window_bounds = array<i64: 256, 256>}, {pipeline_mode = #tpu.pipeline_mode<synchronous>, transform_indices = @transform_14, window_bounds = array<i64: 1, 256>}, {pipeline_mode = #tpu.pipeline_mode<synchronous>, transform_indices = @transform_15, window_bounds = array<i64: 1, 256>}, {pipeline_mode = #tpu.pipeline_mode<synchronous>, transform_indices = @transform_16, window_bounds = array<i64: 1, 1>}, {transform_indices = @transform_17, window_bounds = array<i64: 8, 128>}]} {
    %c0 = arith.constant 0 : index
    %c0_0 = arith.constant 0 : index
    %0 = vector.load %arg1[%c0, %c0_0] : memref<8x128xf32, #tpu.memory_space<vmem>>, vector<8x128xf32>
    %1 = arith.truncf %0 : vector<8x128xf32> to vector<8x128xbf16>
    %c0_1 = arith.constant 0 : index
    %c0_2 = arith.constant 0 : index
    %2 = vector.load %arg2[%c0_1, %c0_2] : memref<128x256xbf16, #tpu.memory_space<vmem>>, vector<128x256xbf16>
    %cst = arith.constant dense<0.000000e+00> : vector<8x256xf32>
    %3 = tpu.matmul %1, %2, %cst {dimension_numbers = #tpu.dot_dimension_numbers<[1], [0], [0], [1], [0, 0, 1, 1], [], []>} : vector<8x128xbf16>, vector<128x256xbf16>, vector<8x256xf32> -> vector<8x256xf32>
    %c0_3 = arith.constant 0 : index
    %c0_4 = arith.constant 0 : index
    %4 = vector.load %arg3[%c0_3, %c0_4] : memref<1x256xf32, #tpu.memory_space<vmem>>, vector<1x256xf32>
    %5 = vector.broadcast %4 : vector<1x256xf32> to vector<8x256xf32>
    %6 = arith.addf %3, %5 : vector<8x256xf32>
    %cst_5 = arith.constant 0.000000e+00 : f32
    %7 = vector.broadcast %cst_5 : f32 to vector<8x256xf32>
    %8 = arith.maximumf %6, %7 : vector<8x256xf32>
    %9 = arith.truncf %8 : vector<8x256xf32> to vector<8x256xbf16>
    %c0_6 = arith.constant 0 : index
    %c0_7 = arith.constant 0 : index
    %10 = vector.load %arg4[%c0_6, %c0_7] : memref<256x256xbf16, #tpu.memory_space<vmem>>, vector<256x256xbf16>
    %cst_8 = arith.constant dense<0.000000e+00> : vector<8x256xf32>
    %11 = tpu.matmul %9, %10, %cst_8 {dimension_numbers = #tpu.dot_dimension_numbers<[1], [0], [0], [1], [0, 0, 1, 1], [], []>} : vector<8x256xbf16>, vector<256x256xbf16>, vector<8x256xf32> -> vector<8x256xf32>
    %c0_9 = arith.constant 0 : index
    %c0_10 = arith.constant 0 : index
    %12 = vector.load %arg5[%c0_9, %c0_10] : memref<1x256xf32, #tpu.memory_space<vmem>>, vector<1x256xf32>
    %13 = vector.broadcast %12 : vector<1x256xf32> to vector<8x256xf32>
    %14 = arith.addf %11, %13 : vector<8x256xf32>
    %cst_11 = arith.constant 0.000000e+00 : f32
    %15 = vector.broadcast %cst_11 : f32 to vector<8x256xf32>
    %16 = arith.maximumf %14, %15 : vector<8x256xf32>
    %17 = arith.truncf %16 : vector<8x256xf32> to vector<8x256xbf16>
    %c0_12 = arith.constant 0 : index
    %c0_13 = arith.constant 0 : index
    %18 = vector.load %arg6[%c0_12, %c0_13] : memref<256x256xbf16, #tpu.memory_space<vmem>>, vector<256x256xbf16>
    %cst_14 = arith.constant dense<0.000000e+00> : vector<8x256xf32>
    %19 = tpu.matmul %17, %18, %cst_14 {dimension_numbers = #tpu.dot_dimension_numbers<[1], [0], [0], [1], [0, 0, 1, 1], [], []>} : vector<8x256xbf16>, vector<256x256xbf16>, vector<8x256xf32> -> vector<8x256xf32>
    %c0_15 = arith.constant 0 : index
    %c0_16 = arith.constant 0 : index
    %20 = vector.load %arg7[%c0_15, %c0_16] : memref<1x256xf32, #tpu.memory_space<vmem>>, vector<1x256xf32>
    %21 = vector.broadcast %20 : vector<1x256xf32> to vector<8x256xf32>
    %22 = arith.addf %19, %21 : vector<8x256xf32>
    %cst_17 = arith.constant 0.000000e+00 : f32
    %23 = vector.broadcast %cst_17 : f32 to vector<8x256xf32>
    %24 = arith.maximumf %22, %23 : vector<8x256xf32>
    %25 = arith.truncf %24 : vector<8x256xf32> to vector<8x256xbf16>
    %c0_18 = arith.constant 0 : index
    %c0_19 = arith.constant 0 : index
    %26 = vector.load %arg8[%c0_18, %c0_19] : memref<256x128xbf16, #tpu.memory_space<vmem>>, vector<256x128xbf16>
    %cst_20 = arith.constant dense<0.000000e+00> : vector<8x128xf32>
    %27 = tpu.matmul %25, %26, %cst_20 {dimension_numbers = #tpu.dot_dimension_numbers<[1], [0], [0], [1], [0, 0, 1, 1], [], []>} : vector<8x256xbf16>, vector<256x128xbf16>, vector<8x128xf32> -> vector<8x128xf32>
    %c0_21 = arith.constant 0 : index
    %c0_22 = arith.constant 0 : index
    %28 = vector.load %arg9[%c0_21, %c0_22] : memref<1x128xf32, #tpu.memory_space<vmem>>, vector<1x128xf32>
    %29 = vector.broadcast %28 : vector<1x128xf32> to vector<8x128xf32>
    %30 = arith.addf %27, %29 : vector<8x128xf32>
    %31 = math.tanh %30 : vector<8x128xf32>
    %32 = arith.truncf %31 : vector<8x128xf32> to vector<8x128xbf16>
    %33 = tpu.concatenate %1, %32 in 1 : vector<8x128xbf16>, vector<8x128xbf16> -> vector<8x256xbf16>
    %c0_23 = arith.constant 0 : index
    %c0_24 = arith.constant 0 : index
    %34 = vector.load %arg10[%c0_23, %c0_24] : memref<256x256xbf16, #tpu.memory_space<vmem>>, vector<256x256xbf16>
    %cst_25 = arith.constant dense<0.000000e+00> : vector<8x256xf32>
    %35 = tpu.matmul %33, %34, %cst_25 {dimension_numbers = #tpu.dot_dimension_numbers<[1], [0], [0], [1], [0, 0, 1, 1], [], []>} : vector<8x256xbf16>, vector<256x256xbf16>, vector<8x256xf32> -> vector<8x256xf32>
    %c0_26 = arith.constant 0 : index
    %c0_27 = arith.constant 0 : index
    %36 = vector.load %arg11[%c0_26, %c0_27] : memref<1x256xf32, #tpu.memory_space<vmem>>, vector<1x256xf32>
    %37 = vector.broadcast %36 : vector<1x256xf32> to vector<8x256xf32>
    %38 = arith.addf %35, %37 : vector<8x256xf32>
    %cst_28 = arith.constant 0.000000e+00 : f32
    %39 = vector.broadcast %cst_28 : f32 to vector<8x256xf32>
    %40 = arith.maximumf %38, %39 : vector<8x256xf32>
    %41 = arith.truncf %40 : vector<8x256xf32> to vector<8x256xbf16>
    %c0_29 = arith.constant 0 : index
    %c0_30 = arith.constant 0 : index
    %42 = vector.load %arg12[%c0_29, %c0_30] : memref<256x256xbf16, #tpu.memory_space<vmem>>, vector<256x256xbf16>
    %cst_31 = arith.constant dense<0.000000e+00> : vector<8x256xf32>
    %43 = tpu.matmul %41, %42, %cst_31 {dimension_numbers = #tpu.dot_dimension_numbers<[1], [0], [0], [1], [0, 0, 1, 1], [], []>} : vector<8x256xbf16>, vector<256x256xbf16>, vector<8x256xf32> -> vector<8x256xf32>
    %c0_32 = arith.constant 0 : index
    %c0_33 = arith.constant 0 : index
    %44 = vector.load %arg13[%c0_32, %c0_33] : memref<1x256xf32, #tpu.memory_space<vmem>>, vector<1x256xf32>
    %45 = vector.broadcast %44 : vector<1x256xf32> to vector<8x256xf32>
    %46 = arith.addf %43, %45 : vector<8x256xf32>
    %cst_34 = arith.constant 0.000000e+00 : f32
    %47 = vector.broadcast %cst_34 : f32 to vector<8x256xf32>
    %48 = arith.maximumf %46, %47 : vector<8x256xf32>
    %49 = arith.truncf %48 : vector<8x256xf32> to vector<8x256xbf16>
    %c0_35 = arith.constant 0 : index
    %c0_36 = arith.constant 0 : index
    %50 = vector.load %arg14[%c0_35, %c0_36] : memref<256x256xbf16, #tpu.memory_space<vmem>>, vector<256x256xbf16>
    %cst_37 = arith.constant dense<0.000000e+00> : vector<8x256xf32>
    %51 = tpu.matmul %49, %50, %cst_37 {dimension_numbers = #tpu.dot_dimension_numbers<[1], [0], [0], [1], [0, 0, 1, 1], [], []>} : vector<8x256xbf16>, vector<256x256xbf16>, vector<8x256xf32> -> vector<8x256xf32>
    %c0_38 = arith.constant 0 : index
    %c0_39 = arith.constant 0 : index
    %52 = vector.load %arg15[%c0_38, %c0_39] : memref<1x256xf32, #tpu.memory_space<vmem>>, vector<1x256xf32>
    %53 = vector.broadcast %52 : vector<1x256xf32> to vector<8x256xf32>
    %54 = arith.addf %51, %53 : vector<8x256xf32>
    %cst_40 = arith.constant 0.000000e+00 : f32
    %55 = vector.broadcast %cst_40 : f32 to vector<8x256xf32>
    %56 = arith.maximumf %54, %55 : vector<8x256xf32>
    %c0_41 = arith.constant 0 : index
    %c0_42 = arith.constant 0 : index
    %57 = vector.load %arg16[%c0_41, %c0_42] : memref<1x256xf32, #tpu.memory_space<vmem>>, vector<1x256xf32>
    %58 = vector.broadcast %57 : vector<1x256xf32> to vector<8x256xf32>
    %59 = arith.mulf %56, %58 : vector<8x256xf32>
    %cst_43 = arith.constant dense<0.000000e+00> : vector<8xf32>
    %60 = vector.multi_reduction <add>, %59, %cst_43 [1] : vector<8x256xf32> to vector<8xf32>
    %61 = vector.shape_cast %60 : vector<8xf32> to vector<8x1xf32>
    %c0_44 = arith.constant 0 : index
    %c0_45 = arith.constant 0 : index
    %62 = vector.load %arg17[%c0_44, %c0_45] : memref<1x1xf32, #tpu.memory_space<vmem>>, vector<1x1xf32>
    %63 = vector.broadcast %62 : vector<1x1xf32> to vector<8x1xf32>
    %64 = arith.addf %61, %63 : vector<8x1xf32>
    %65 = vector.shape_cast %64 : vector<8x1xf32> to vector<8x1xf32>
    %66 = vector.broadcast %65 : vector<8x1xf32> to vector<8x128xf32>
    %c0_46 = arith.constant 0 : index
    %c0_47 = arith.constant 0 : index
    %67 = vector.load %arg18[%c0_46, %c0_47] : memref<8x128xf32, #tpu.memory_space<vmem>>, vector<8x128xf32>
    tpu.vector_store %arg18[%c0_46, %c0_47], %66 {strides = array<i32>} : memref<8x128xf32, #tpu.memory_space<vmem>>, vector<8x128xf32>,
    return
  }
  func.func @transform_0(%arg0: i32) -> (i32, i32) {
    %c0_i32 = arith.constant 0 : i32
    %c0_i32_0 = arith.constant 0 : i32
    return %arg0, %c0_i32 : i32, i32
  }
  func.func @transform_1(%arg0: i32) -> (i32, i32) {
    %c0_i32 = arith.constant 0 : i32
    %c0_i32_0 = arith.constant 0 : i32
    %c0_i32_1 = arith.constant 0 : i32
    return %c0_i32, %c0_i32_0 : i32, i32
  }
  func.func @transform_2(%arg0: i32) -> (i32, i32) {
    %c0_i32 = arith.constant 0 : i32
    %c0_i32_0 = arith.constant 0 : i32
    %c0_i32_1 = arith.constant 0 : i32
    return %c0_i32, %c0_i32_0 : i32, i32
  }
  func.func @transform_3(%arg0: i32) -> (i32, i32) {
    %c0_i32 = arith.constant 0 : i32
    %c0_i32_0 = arith.constant 0 : i32
    %c0_i32_1 = arith.constant 0 : i32
    return %c0_i32, %c0_i32_0 : i32, i32
  }
  func.func @transform_4(%arg0: i32) -> (i32, i32) {
    %c0_i32 = arith.constant 0 : i32
    %c0_i32_0 = arith.constant 0 : i32
    %c0_i32_1 = arith.constant 0 : i32
    return %c0_i32, %c0_i32_0 : i32, i32
  }
  func.func @transform_5(%arg0: i32) -> (i32, i32) {
    %c0_i32 = arith.constant 0 : i32
    %c0_i32_0 = arith.constant 0 : i32
    %c0_i32_1 = arith.constant 0 : i32
    return %c0_i32, %c0_i32_0 : i32, i32
  }
  func.func @transform_6(%arg0: i32) -> (i32, i32) {
    %c0_i32 = arith.constant 0 : i32
    %c0_i32_0 = arith.constant 0 : i32
    %c0_i32_1 = arith.constant 0 : i32
    return %c0_i32, %c0_i32_0 : i32, i32
  }
  func.func @transform_7(%arg0: i32) -> (i32, i32) {
    %c0_i32 = arith.constant 0 : i32
    %c0_i32_0 = arith.constant 0 : i32
    %c0_i32_1 = arith.constant 0 : i32
    return %c0_i32, %c0_i32_0 : i32, i32
  }
  func.func @transform_8(%arg0: i32) -> (i32, i32) {
    %c0_i32 = arith.constant 0 : i32
    %c0_i32_0 = arith.constant 0 : i32
    %c0_i32_1 = arith.constant 0 : i32
    return %c0_i32, %c0_i32_0 : i32, i32
  }
  func.func @transform_9(%arg0: i32) -> (i32, i32) {
    %c0_i32 = arith.constant 0 : i32
    %c0_i32_0 = arith.constant 0 : i32
    %c0_i32_1 = arith.constant 0 : i32
    return %c0_i32, %c0_i32_0 : i32, i32
  }
  func.func @transform_10(%arg0: i32) -> (i32, i32) {
    %c0_i32 = arith.constant 0 : i32
    %c0_i32_0 = arith.constant 0 : i32
    %c0_i32_1 = arith.constant 0 : i32
    return %c0_i32, %c0_i32_0 : i32, i32
  }
  func.func @transform_11(%arg0: i32) -> (i32, i32) {
    %c0_i32 = arith.constant 0 : i32
    %c0_i32_0 = arith.constant 0 : i32
    %c0_i32_1 = arith.constant 0 : i32
    return %c0_i32, %c0_i32_0 : i32, i32
  }
  func.func @transform_12(%arg0: i32) -> (i32, i32) {
    %c0_i32 = arith.constant 0 : i32
    %c0_i32_0 = arith.constant 0 : i32
    %c0_i32_1 = arith.constant 0 : i32
    return %c0_i32, %c0_i32_0 : i32, i32
  }
  func.func @transform_13(%arg0: i32) -> (i32, i32) {
    %c0_i32 = arith.constant 0 : i32
    %c0_i32_0 = arith.constant 0 : i32
    %c0_i32_1 = arith.constant 0 : i32
    return %c0_i32, %c0_i32_0 : i32, i32
  }
  func.func @transform_14(%arg0: i32) -> (i32, i32) {
    %c0_i32 = arith.constant 0 : i32
    %c0_i32_0 = arith.constant 0 : i32
    %c0_i32_1 = arith.constant 0 : i32
    return %c0_i32, %c0_i32_0 : i32, i32
  }
  func.func @transform_15(%arg0: i32) -> (i32, i32) {
    %c0_i32 = arith.constant 0 : i32
    %c0_i32_0 = arith.constant 0 : i32
    %c0_i32_1 = arith.constant 0 : i32
    return %c0_i32, %c0_i32_0 : i32, i32
  }
  func.func @transform_16(%arg0: i32) -> (i32, i32) {
    %c0_i32 = arith.constant 0 : i32
    %c0_i32_0 = arith.constant 0 : i32
    %c0_i32_1 = arith.constant 0 : i32
    return %c0_i32, %c0_i32_0 : i32, i32
  }
  func.func @transform_17(%arg0: i32) -> (i32, i32) {
    %c0_i32 = arith.constant 0 : i32
    %c0_i32_0 = arith.constant 0 : i32
    return %arg0, %c0_i32 : i32, i32
  }
}

</mosaic_0001>

<llo_original>
// kernel: tpu_custom_call.1
$region0: #{tpu_custom_call.1}
  #allocation0 [shape = 'u32[]', space=smem, size = 0x4, offset = 0x4, fixed_abs, tag = 'smem constant byte address 0x4 - core index']
  #allocation1 [shape = 'u32[72,128]{1,0:T(1,128)}', space=vmem, size = 0x9000, scoped, tag = 'internal scratch']
  #allocation2 [shape = 'f32[1,1]{1,0:T(1,128)S(1)}', space=vmem, size = 0x200, scoped, tag = 'scoped memory for tpu_custom_call.1']
  %s0 = inlined_call_operand.hbm [shape: f32[8,128], index: 0, kind: input, shape index: {}]
  %s1 = inlined_call_operand.hbm [shape: bf16[128,256], index: 1, kind: input, shape index: {}]
  %s2 = inlined_call_operand.vmem [shape: f32[1,256], index: 2, kind: input, shape index: {}]
  %s3 = inlined_call_operand.hbm [shape: bf16[256,256], index: 3, kind: input, shape index: {}]
  %s4 = inlined_call_operand.vmem [shape: f32[1,256], index: 4, kind: input, shape index: {}]
  %s5 = inlined_call_operand.hbm [shape: bf16[256,256], index: 5, kind: input, shape index: {}]
  %s6 = inlined_call_operand.vmem [shape: f32[1,256], index: 6, kind: input, shape index: {}]
  %s7 = inlined_call_operand.hbm [shape: bf16[256,128], index: 7, kind: input, shape index: {}]
  %s8 = inlined_call_operand.hbm [shape: f32[1,128], index: 8, kind: input, shape index: {}]
  %s9 = inlined_call_operand.hbm [shape: bf16[256,256], index: 9, kind: input, shape index: {}]
  %s10 = inlined_call_operand.vmem [shape: f32[1,256], index: 10, kind: input, shape index: {}]
  %s11 = inlined_call_operand.hbm [shape: bf16[256,256], index: 11, kind: input, shape index: {}]
  %s12 = inlined_call_operand.vmem [shape: f32[1,256], index: 12, kind: input, shape index: {}]
  %s13 = inlined_call_operand.hbm [shape: bf16[256,256], index: 13, kind: input, shape index: {}]
  %s14 = inlined_call_operand.vmem [shape: f32[1,256], index: 14, kind: input, shape index: {}]
  %s15 = inlined_call_operand.vmem [shape: f32[1,256], index: 15, kind: input, shape index: {}]
  %s16 = inlined_call_operand.<no memory space> [shape: f32[1,1], index: 16, kind: input, shape index: {}]
  %s17 = inlined_call_operand.hbm [shape: f32[8,128], index: 17, kind: output, shape index: {}]
  %s18 = sld [smem:[#allocation0]]
  $region114: #{tpu_custom_call.1} parent=0
    _
  %s20 = ssub.s32 1, %s18
  %s21 = scalar_select 0, %s20, %s18
  %v22 = vstv %s16
  %23 = vst [vmem:[#allocation2] sm:$0x1] %v22
  $region1: #{tpu_custom_call.1} parent=0
    #allocation3 [shape = 'u8[4096]{0}', space=vmem, size = 0x1000, scoped, tag = 'input window, operand 0, single buffered']
    #allocation4 [shape = 's32[1]{0}', space=sflag, size = 0x4, scoped, tag = 'scoped memory for tpu_custom_call.1']
    #allocation5 [shape = 's32[1]{0}', space=sflag, size = 0x4, scoped, tag = 'scoped memory for tpu_custom_call.1']
    #allocation6 [shape = 'u8[65536]{0}', space=vmem, size = 0x10000, scoped, tag = 'input window, operand 1, single buffered']
    #allocation7 [shape = 's32[1]{0}', space=sflag, size = 0x4, scoped, tag = 'scoped memory for tpu_custom_call.1']
    #allocation8 [shape = 'u8[131072]{0}', space=vmem, size = 0x20000, scoped, tag = 'input window, operand 3, single buffered']
    #allocation9 [shape = 'u8[131072]{0}', space=vmem, size = 0x20000, scoped, tag = 'input window, operand 5, single buffered']
    #allocation10 [shape = 's32[1]{0}', space=sflag, size = 0x4, scoped, tag = 'scoped memory for tpu_custom_call.1']
    #allocation11 [shape = 'u8[65536]{0}', space=vmem, size = 0x10000, scoped, tag = 'input window, operand 7, single buffered']
    #allocation12 [shape = 'u8[512]{0}', space=vmem, size = 0x400, scoped, tag = 'input window, operand 8, single buffered']
    #allocation13 [shape = 's32[1]{0}', space=sflag, size = 0x4, scoped, tag = 'scoped memory for tpu_custom_call.1']
    #allocation14 [shape = 'u8[131072]{0}', space=vmem, size = 0x20000, scoped, tag = 'input window, operand 9, single buffered']
    #allocation15 [shape = 'u8[131072]{0}', space=vmem, size = 0x20000, scoped, tag = 'input window, operand 11, single buffered']
    #allocation16 [shape = 's32[1]{0}', space=sflag, size = 0x4, scoped, tag = 'scoped memory for tpu_custom_call.1']
    #allocation17 [shape = 'u8[131072]{0}', space=vmem, size = 0x20000, scoped, tag = 'input window, operand 13, single buffered']
    #allocation18 [shape = 'u8[4096]{0}', space=vmem, size = 0x1000, scoped, tag = 'output window, operand 0, single buffered']
    %24 = vsyncpa [#allocation4], 0
    %25 = vsyncpa [#allocation7], 0
    %26 = vsyncpa [#allocation10], 0
    %27 = vsyncpa [#allocation13], 0
    %28 = vsyncpa [#allocation16], 0
    %29 = vsyncpa [#allocation5], 0
    // Predicated region
    $region2: #{tpu_custom_call.1} parent=1 // pred_check
      _
    $region3: #{tpu_custom_call.1} parent=1 // pred_check_branch
      %31 = sbr.rel (0) target = $region5
    $region4: #{tpu_custom_call.1} parent=1 // pred_region
      %33 = vsyncadd [#allocation4], 0
      %s35 = sshll.u32 %s0, 4
      %s36 = int_to_ptr.hbm [resolvable:$true] %s35
      %s37 = sshll.u32 [#allocation3], 4
      %s38 = int_to_ptr.vmem [resolvable:$true] %s37
      %40 = dma.hbm_to_vmem [thread:$0]  %s36, 128, %s38, [#allocation4]
    $region5: #{tpu_custom_call.1} parent=1 // pred_fallthru
      _
    // Predicated region
    $region6: #{tpu_custom_call.1} parent=1 // pred_check
      _
    $region7: #{tpu_custom_call.1} parent=1 // pred_check_branch
      %42 = sbr.rel (0) target = $region9
    $region8: #{tpu_custom_call.1} parent=1 // pred_region
      %44 = vsyncadd [#allocation7], 0
      %s45 = sshll.u32 %s1, 4
      %s46 = int_to_ptr.hbm [resolvable:$true] %s45
      %s47 = sshll.u32 [#allocation6], 4
      %s48 = int_to_ptr.vmem [resolvable:$true] %s47
      %53 = dma.hbm_to_vmem [thread:$0]  %s46, 2048, %s48, [#allocation7], 128, 128, 8
    $region9: #{tpu_custom_call.1} parent=1 // pred_fallthru
      _
    // Predicated region
    $region10: #{tpu_custom_call.1} parent=1 // pred_check
      _
    $region11: #{tpu_custom_call.1} parent=1 // pred_check_branch
      %55 = sbr.rel (0) target = $region13
    $region12: #{tpu_custom_call.1} parent=1 // pred_region
      _
    $region13: #{tpu_custom_call.1} parent=1 // pred_fallthru
      _
    // Predicated region
    $region14: #{tpu_custom_call.1} parent=1 // pred_check
      _
    $region15: #{tpu_custom_call.1} parent=1 // pred_check_branch
      %57 = sbr.rel (0) target = $region17
    $region16: #{tpu_custom_call.1} parent=1 // pred_region
      %59 = vsyncadd [#allocation7], 0
      %s60 = sshll.u32 %s3, 4
      %s61 = int_to_ptr.hbm [resolvable:$true] %s60
      %s62 = sshll.u32 [#allocation8], 4
      %s63 = int_to_ptr.vmem [resolvable:$true] %s62
      %68 = dma.hbm_to_vmem [thread:$0]  %s61, 4096, %s63, [#allocation7], 128, 128, 8
    $region17: #{tpu_custom_call.1} parent=1 // pred_fallthru
      _
    // Predicated region
    $region18: #{tpu_custom_call.1} parent=1 // pred_check
      _
    $region19: #{tpu_custom_call.1} parent=1 // pred_check_branch
      %70 = sbr.rel (0) target = $region21
    $region20: #{tpu_custom_call.1} parent=1 // pred_region
      _
    $region21: #{tpu_custom_call.1} parent=1 // pred_fallthru
      _
    // Predicated region
    $region22: #{tpu_custom_call.1} parent=1 // pred_check
      _
    $region23: #{tpu_custom_call.1} parent=1 // pred_check_branch
      %72 = sbr.rel (0) target = $region25
    $region24: #{tpu_custom_call.1} parent=1 // pred_region
      %74 = vsyncadd [#allocation10], 0
      %s75 = sshll.u32 %s5, 4
      %s76 = int_to_ptr.hbm [resolvable:$true] %s75
      %s77 = sshll.u32 [#allocation9], 4
      %s78 = int_to_ptr.vmem [resolvable:$true] %s77
      %83 = dma.hbm_to_vmem [thread:$0]  %s76, 4096, %s78, [#allocation10], 128, 128, 8
    $region25: #{tpu_custom_call.1} parent=1 // pred_fallthru
      _
    // Predicated region
    $region26: #{tpu_custom_call.1} parent=1 // pred_check
      _
    $region27: #{tpu_custom_call.1} parent=1 // pred_check_branch
      %85 = sbr.rel (0) target = $region29
    $region28: #{tpu_custom_call.1} parent=1 // pred_region
      _
    $region29: #{tpu_custom_call.1} parent=1 // pred_fallthru
      _
    // Predicated region
    $region30: #{tpu_custom_call.1} parent=1 // pred_check
      _
    $region31: #{tpu_custom_call.1} parent=1 // pred_check_branch
      %87 = sbr.rel (0) target = $region33
    $region32: #{tpu_custom_call.1} parent=1 // pred_region
      %89 = vsyncadd [#allocation10], 0
      %s90 = sshll.u32 %s7, 4
      %s91 = int_to_ptr.hbm [resolvable:$true] %s90
      %s92 = sshll.u32 [#allocation11], 4
      %s93 = int_to_ptr.vmem [resolvable:$true] %s92
      %98 = dma.hbm_to_vmem [thread:$0]  %s91, 2048, %s93, [#allocation10], 64, 64, 4
    $region33: #{tpu_custom_call.1} parent=1 // pred_fallthru
      _
    // Predicated region
    $region34: #{tpu_custom_call.1} parent=1 // pred_check
      _
    $region35: #{tpu_custom_call.1} parent=1 // pred_check_branch
      %100 = sbr.rel (0) target = $region37
    $region36: #{tpu_custom_call.1} parent=1 // pred_region
      %102 = vsyncadd [#allocation13], 0
      %s104 = sshll.u32 %s8, 4
      %s105 = int_to_ptr.hbm [resolvable:$true] %s104
      %s106 = sshll.u32 [#allocation12], 4
      %s107 = int_to_ptr.vmem [resolvable:$true] %s106
      %109 = dma.hbm_to_vmem [thread:$0]  %s105, 16, %s107, [#allocation13]
    $region37: #{tpu_custom_call.1} parent=1 // pred_fallthru
      _
    // Predicated region
    $region38: #{tpu_custom_call.1} parent=1 // pred_check
      _
    $region39: #{tpu_custom_call.1} parent=1 // pred_check_branch
      %111 = sbr.rel (0) target = $region41
    $region40: #{tpu_custom_call.1} parent=1 // pred_region
      %113 = vsyncadd [#allocation13], 0
      %s114 = sshll.u32 %s9, 4
      %s115 = int_to_ptr.hbm [resolvable:$true] %s114
      %s116 = sshll.u32 [#allocation14], 4
      %s117 = int_to_ptr.vmem [resolvable:$true] %s116
      %122 = dma.hbm_to_vmem [thread:$0]  %s115, 4096, %s117, [#allocation13], 128, 128, 8
    $region41: #{tpu_custom_call.1} parent=1 // pred_fallthru
      _
    // Predicated region
    $region42: #{tpu_custom_call.1} parent=1 // pred_check
      _
    $region43: #{tpu_custom_call.1} parent=1 // pred_check_branch
      %124 = sbr.rel (0) target = $region45
    $region44: #{tpu_custom_call.1} parent=1 // pred_region
      _
    $region45: #{tpu_custom_call.1} parent=1 // pred_fallthru
      _
    // Predicated region
    $region46: #{tpu_custom_call.1} parent=1 // pred_check
      _
    $region47: #{tpu_custom_call.1} parent=1 // pred_check_branch
      %126 = sbr.rel (0) target = $region49
    $region48: #{tpu_custom_call.1} parent=1 // pred_region
      %128 = vsyncadd [#allocation16], 0
      %s129 = sshll.u32 %s11, 4
      %s130 = int_to_ptr.hbm [resolvable:$true] %s129
      %s131 = sshll.u32 [#allocation15], 4
      %s132 = int_to_ptr.vmem [resolvable:$true] %s131
      %137 = dma.hbm_to_vmem [thread:$0]  %s130, 4096, %s132, [#allocation16], 128, 128, 8
    $region49: #{tpu_custom_call.1} parent=1 // pred_fallthru
      _
    // Predicated region
    $region50: #{tpu_custom_call.1} parent=1 // pred_check
      _
    $region51: #{tpu_custom_call.1} parent=1 // pred_check_branch
      %139 = sbr.rel (0) target = $region53
    $region52: #{tpu_custom_call.1} parent=1 // pred_region
      _
    $region53: #{tpu_custom_call.1} parent=1 // pred_fallthru
      _
    // Predicated region
    $region54: #{tpu_custom_call.1} parent=1 // pred_check
      _
    $region55: #{tpu_custom_call.1} parent=1 // pred_check_branch
      %141 = sbr.rel (0) target = $region57
    $region56: #{tpu_custom_call.1} parent=1 // pred_region
      %143 = vsyncadd [#allocation16], 0
      %s144 = sshll.u32 %s13, 4
      %s145 = int_to_ptr.hbm [resolvable:$true] %s144
      %s146 = sshll.u32 [#allocation17], 4
      %s147 = int_to_ptr.vmem [resolvable:$true] %s146
      %152 = dma.hbm_to_vmem [thread:$0]  %s145, 4096, %s147, [#allocation16], 128, 128, 8
    $region57: #{tpu_custom_call.1} parent=1 // pred_fallthru
      _
    // Predicated region
    $region58: #{tpu_custom_call.1} parent=1 // pred_check
      _
    $region59: #{tpu_custom_call.1} parent=1 // pred_check_branch
      %154 = sbr.rel (0) target = $region61
    $region60: #{tpu_custom_call.1} parent=1 // pred_region
      _
    $region61: #{tpu_custom_call.1} parent=1 // pred_fallthru
      _
    // Predicated region
    $region62: #{tpu_custom_call.1} parent=1 // pred_check
      _
    $region63: #{tpu_custom_call.1} parent=1 // pred_check_branch
      %156 = sbr.rel (0) target = $region65
    $region64: #{tpu_custom_call.1} parent=1 // pred_region
      _
    $region65: #{tpu_custom_call.1} parent=1 // pred_fallthru
      _
    // Predicated region
    $region66: #{tpu_custom_call.1} parent=1 // pred_check
      _
    $region67: #{tpu_custom_call.1} parent=1 // pred_check_branch
      %158 = sbr.rel (0) target = $region69
    $region68: #{tpu_custom_call.1} parent=1 // pred_region
      _
    $region69: #{tpu_custom_call.1} parent=1 // pred_fallthru
      _
    // Predicated region
    $region70: #{tpu_custom_call.1} parent=1 // pred_check
      _
    $region71: #{tpu_custom_call.1} parent=1 // pred_check_branch
      %160 = sbr.rel (0) target = $region73
    $region72: #{tpu_custom_call.1} parent=1 // pred_region
      %162 = dma.done [#allocation4], 128
    $region73: #{tpu_custom_call.1} parent=1 // pred_fallthru
      _
    // Predicated region
    $region74: #{tpu_custom_call.1} parent=1 // pred_check
      _
    $region75: #{tpu_custom_call.1} parent=1 // pred_check_branch
      %164 = sbr.rel (0) target = $region77
    $region76: #{tpu_custom_call.1} parent=1 // pred_region
      %166 = dma.done [#allocation7], 2048
    $region77: #{tpu_custom_call.1} parent=1 // pred_fallthru
      _
    // Predicated region
    $region78: #{tpu_custom_call.1} parent=1 // pred_check
      _
    $region79: #{tpu_custom_call.1} parent=1 // pred_check_branch
      %168 = sbr.rel (0) target = $region81
    $region80: #{tpu_custom_call.1} parent=1 // pred_region
      %170 = dma.done [#allocation7], 4096
    $region81: #{tpu_custom_call.1} parent=1 // pred_fallthru
      _
    // Predicated region
    $region82: #{tpu_custom_call.1} parent=1 // pred_check
      _
    $region83: #{tpu_custom_call.1} parent=1 // pred_check_branch
      %172 = sbr.rel (0) target = $region85
    $region84: #{tpu_custom_call.1} parent=1 // pred_region
      %174 = dma.done [#allocation10], 4096
    $region85: #{tpu_custom_call.1} parent=1 // pred_fallthru
      _
    // Predicated region
    $region86: #{tpu_custom_call.1} parent=1 // pred_check
      _
    $region87: #{tpu_custom_call.1} parent=1 // pred_check_branch
      %176 = sbr.rel (0) target = $region89
    $region88: #{tpu_custom_call.1} parent=1 // pred_region
      %178 = dma.done [#allocation10], 2048
    $region89: #{tpu_custom_call.1} parent=1 // pred_fallthru
      _
    // Predicated region
    $region90: #{tpu_custom_call.1} parent=1 // pred_check
      _
    $region91: #{tpu_custom_call.1} parent=1 // pred_check_branch
      %180 = sbr.rel (0) target = $region93
    $region92: #{tpu_custom_call.1} parent=1 // pred_region
      %182 = dma.done [#allocation13], 16
    $region93: #{tpu_custom_call.1} parent=1 // pred_fallthru
      _
    // Predicated region
    $region94: #{tpu_custom_call.1} parent=1 // pred_check
      _
    $region95: #{tpu_custom_call.1} parent=1 // pred_check_branch
      %184 = sbr.rel (0) target = $region97
    $region96: #{tpu_custom_call.1} parent=1 // pred_region
      %186 = dma.done [#allocation13], 4096
    $region97: #{tpu_custom_call.1} parent=1 // pred_fallthru
      _
    // Predicated region
    $region98: #{tpu_custom_call.1} parent=1 // pred_check
      _
    $region99: #{tpu_custom_call.1} parent=1 // pred_check_branch
      %188 = sbr.rel (0) target = $region101
    $region100: #{tpu_custom_call.1} parent=1 // pred_region
      %190 = dma.done [#allocation16], 4096
    $region101: #{tpu_custom_call.1} parent=1 // pred_fallthru
      _
    // Predicated region
    $region102: #{tpu_custom_call.1} parent=1 // pred_check
      _
    $region103: #{tpu_custom_call.1} parent=1 // pred_check_branch
      %192 = sbr.rel (0) target = $region105
    $region104: #{tpu_custom_call.1} parent=1 // pred_region
      %194 = dma.done [#allocation16], 4096
    $region105: #{tpu_custom_call.1} parent=1 // pred_fallthru
      _
    %v195 = vld [vmem:[#allocation3] sm:$0xff]
    %v196 = vpack.c.bf16 %v195, %v195
    %v197 = vld [vmem:[#allocation6] sm:$0xff]
    %v198 = vld [vmem:[#allocation6 + $0x8] sm:$0xff]
    %v199 = vld [vmem:[#allocation6 + $0x10] sm:$0xff]
    %v200 = vld [vmem:[#allocation6 + $0x18] sm:$0xff]
    %v201 = vld [vmem:[#allocation6 + $0x20] sm:$0xff]
    %v202 = vld [vmem:[#allocation6 + $0x28] sm:$0xff]
    %v203 = vld [vmem:[#allocation6 + $0x30] sm:$0xff]
    %v204 = vld [vmem:[#allocation6 + $0x38] sm:$0xff]
    %v205 = vld [vmem:[#allocation6 + $0x40] sm:$0xff]
    %v206 = vld [vmem:[#allocation6 + $0x48] sm:$0xff]
    %v207 = vld [vmem:[#allocation6 + $0x50] sm:$0xff]
    %v208 = vld [vmem:[#allocation6 + $0x58] sm:$0xff]
    %v209 = vld [vmem:[#allocation6 + $0x60] sm:$0xff]
    %v210 = vld [vmem:[#allocation6 + $0x68] sm:$0xff]
    %v211 = vld [vmem:[#allocation6 + $0x70] sm:$0xff]
    %v212 = vld [vmem:[#allocation6 + $0x78] sm:$0xff]
    %v213 = vld [vmem:[%s2] sm:$0x3]
    %v215 = vperm.slane %v213, 0
    %v216 = vperm.slane %v213, 1
    %v235 = vunpack.c.l.b16 %v197
    %v236 = vunpack.c.h.b16 %v197
    %v237 = vunpack.c.l.b16 %v198
    %v238 = vunpack.c.h.b16 %v198
    %v239 = vunpack.c.l.b16 %v199
    %v240 = vunpack.c.h.b16 %v199
    %v241 = vunpack.c.l.b16 %v200
    %v242 = vunpack.c.h.b16 %v200
    %v243 = vunpack.c.l.b16 %v201
    %v244 = vunpack.c.h.b16 %v201
    %v245 = vunpack.c.l.b16 %v202
    %v246 = vunpack.c.h.b16 %v202
    %v247 = vunpack.c.l.b16 %v203
    %v248 = vunpack.c.h.b16 %v203
    %v249 = vunpack.c.l.b16 %v204
    %v250 = vunpack.c.h.b16 %v204
    %v251 = vunpack.c.l.b16 %v205
    %v252 = vunpack.c.h.b16 %v205
    %v253 = vunpack.c.l.b16 %v206
    %v254 = vunpack.c.h.b16 %v206
    %v255 = vunpack.c.l.b16 %v207
    %v256 = vunpack.c.h.b16 %v207
    %v257 = vunpack.c.l.b16 %v208
    %v258 = vunpack.c.h.b16 %v208
    %v259 = vunpack.c.l.b16 %v209
    %v260 = vunpack.c.h.b16 %v209
    %v261 = vunpack.c.l.b16 %v210
    %v262 = vunpack.c.h.b16 %v210
    %v263 = vunpack.c.l.b16 %v211
    %v264 = vunpack.c.h.b16 %v211
    %v265 = vunpack.c.l.b16 %v212
    %v266 = vunpack.c.h.b16 %v212
    %v267 = vpack.c.b16 %v237, %v235
    %v268 = vpack.c.b16 %v238, %v236
    %v269 = vpack.c.b16 %v241, %v239
    %v270 = vpack.c.b16 %v242, %v240
    %v271 = vpack.c.b16 %v245, %v243
    %v272 = vpack.c.b16 %v246, %v244
    %v273 = vpack.c.b16 %v249, %v247
    %v274 = vpack.c.b16 %v250, %v248
    %v275 = vpack.c.b16 %v253, %v251
    %v276 = vpack.c.b16 %v254, %v252
    %v277 = vpack.c.b16 %v257, %v255
    %v278 = vpack.c.b16 %v258, %v256
    %v279 = vpack.c.b16 %v261, %v259
    %v280 = vpack.c.b16 %v262, %v260
    %v281 = vpack.c.b16 %v265, %v263
    %v282 = vpack.c.b16 %v266, %v264
    %299 = vmatpush.bf16.msra.mxu0 %v281
    %300 = vmatpush.bf16.msra.mxu0 %v279
    %301 = vmatpush.bf16.msra.mxu0 %v277
    %302 = vmatpush.bf16.msra.mxu0 %v275
    %303 = vmatpush.bf16.msra.mxu0 %v273
    %304 = vmatpush.bf16.msra.mxu0 %v271
    %305 = vmatpush.bf16.msra.mxu0 %v269
    %306 = vmatpush.bf16.msra.mxu0 %v267
    %307 = vmatmul.bf16.gmra.mxu0 %v196
    %v308 = vpop.f32.mrf.mxu0
    %v309 = vadd.f32 %v215, %v308
    %v310 = vpop.f32.mrf.mxu0
    %311 = vdwg.mxu0
    %312 = vmatpush.bf16.msra.mxu0 %v282
    %313 = vmatpush.bf16.msra.mxu0 %v280
    %314 = vmatpush.bf16.msra.mxu0 %v278
    %315 = vmatpush.bf16.msra.mxu0 %v276
    %316 = vmatpush.bf16.msra.mxu0 %v274
    %317 = vmatpush.bf16.msra.mxu0 %v272
    %318 = vmatpush.bf16.msra.mxu0 %v270
    %319 = vmatpush.bf16.msra.mxu0 %v268
    %320 = vmatmul.bf16.gmra.mxu0 %v196
    %v321 = vpop.f32.mrf.mxu0
    %v322 = vadd.f32 %v216, %v321
    %v323 = vpop.f32.mrf.mxu0
    %324 = vdwg.mxu0
    %v325 = vmax.f32 %v309, 0.0
    %v326 = vmax.f32 %v322, 0.0
    %v327 = vpack.c.bf16 %v325, %v325
    %v328 = vpack.c.bf16 %v326, %v326
    %v329 = vld [vmem:[#allocation8] sm:$0xff]
    %v330 = vld [vmem:[#allocation8 + $0x8] sm:$0xff]
    %v331 = vld [vmem:[#allocation8 + $0x10] sm:$0xff]
    %v332 = vld [vmem:[#allocation8 + $0x18] sm:$0xff]
    %v333 = vld [vmem:[#allocation8 + $0x20] sm:$0xff]
    %v334 = vld [vmem:[#allocation8 + $0x28] sm:$0xff]
    %v335 = vld [vmem:[#allocation8 + $0x30] sm:$0xff]
    %v336 = vld [vmem:[#allocation8 + $0x38] sm:$0xff]
    %v337 = vld [vmem:[#allocation8 + $0x40] sm:$0xff]
    %v338 = vld [vmem:[#allocation8 + $0x48] sm:$0xff]
    %v339 = vld [vmem:[#allocation8 + $0x50] sm:$0xff]
    %v340 = vld [vmem:[#allocation8 + $0x58] sm:$0xff]
    %v341 = vld [vmem:[#allocation8 + $0x60] sm:$0xff]
    %v342 = vld [vmem:[#allocation8 + $0x68] sm:$0xff]
    %v343 = vld [vmem:[#allocation8 + $0x70] sm:$0xff]
    %v344 = vld [vmem:[#allocation8 + $0x78] sm:$0xff]
    %v345 = vld [vmem:[#allocation8 + $0x80] sm:$0xff]
    %v346 = vld [vmem:[#allocation8 + $0x88] sm:$0xff]
    %v347 = vld [vmem:[#allocation8 + $0x90] sm:$0xff]
    %v348 = vld [vmem:[#allocation8 + $0x98] sm:$0xff]
    %v349 = vld [vmem:[#allocation8 + $0xa0] sm:$0xff]
    %v350 = vld [vmem:[#allocation8 + $0xa8] sm:$0xff]
    %v351 = vld [vmem:[#allocation8 + $0xb0] sm:$0xff]
    %v352 = vld [vmem:[#allocation8 + $0xb8] sm:$0xff]
    %v353 = vld [vmem:[#allocation8 + $0xc0] sm:$0xff]
    %v354 = vld [vmem:[#allocation8 + $0xc8] sm:$0xff]
    %v355 = vld [vmem:[#allocation8 + $0xd0] sm:$0xff]
    %v356 = vld [vmem:[#allocation8 + $0xd8] sm:$0xff]
    %v357 = vld [vmem:[#allocation8 + $0xe0] sm:$0xff]
    %v358 = vld [vmem:[#allocation8 + $0xe8] sm:$0xff]
    %v359 = vld [vmem:[#allocation8 + $0xf0] sm:$0xff]
    %v360 = vld [vmem:[#allocation8 + $0xf8] sm:$0xff]
    %v361 = vld [vmem:[%s4] sm:$0x3]
    %v363 = vperm.slane %v361, 0
    %v364 = vperm.slane %v361, 1
    %v399 = vunpack.c.l.b16 %v329
    %v400 = vunpack.c.h.b16 %v329
    %v401 = vunpack.c.l.b16 %v330
    %v402 = vunpack.c.h.b16 %v330
    %v403 = vunpack.c.l.b16 %v331
    %v404 = vunpack.c.h.b16 %v331
    %v405 = vunpack.c.l.b16 %v332
    %v406 = vunpack.c.h.b16 %v332
    %v407 = vunpack.c.l.b16 %v333
    %v408 = vunpack.c.h.b16 %v333
    %v409 = vunpack.c.l.b16 %v334
    %v410 = vunpack.c.h.b16 %v334
    %v411 = vunpack.c.l.b16 %v335
    %v412 = vunpack.c.h.b16 %v335
    %v413 = vunpack.c.l.b16 %v336
    %v414 = vunpack.c.h.b16 %v336
    %v415 = vunpack.c.l.b16 %v337
    %v416 = vunpack.c.h.b16 %v337
    %v417 = vunpack.c.l.b16 %v338
    %v418 = vunpack.c.h.b16 %v338
    %v419 = vunpack.c.l.b16 %v339
    %v420 = vunpack.c.h.b16 %v339
    %v421 = vunpack.c.l.b16 %v340
    %v422 = vunpack.c.h.b16 %v340
    %v423 = vunpack.c.l.b16 %v341
    %v424 = vunpack.c.h.b16 %v341
    %v425 = vunpack.c.l.b16 %v342
    %v426 = vunpack.c.h.b16 %v342
    %v427 = vunpack.c.l.b16 %v343
    %v428 = vunpack.c.h.b16 %v343
    %v429 = vunpack.c.l.b16 %v344
    %v430 = vunpack.c.h.b16 %v344
    %v431 = vunpack.c.l.b16 %v345
    %v432 = vunpack.c.h.b16 %v345
    %v433 = vunpack.c.l.b16 %v346
    %v434 = vunpack.c.h.b16 %v346
    %v435 = vunpack.c.l.b16 %v347
    %v436 = vunpack.c.h.b16 %v347
    %v437 = vunpack.c.l.b16 %v348
    %v438 = vunpack.c.h.b16 %v348
    %v439 = vunpack.c.l.b16 %v349
    %v440 = vunpack.c.h.b16 %v349
    %v441 = vunpack.c.l.b16 %v350
    %v442 = vunpack.c.h.b16 %v350
    %v443 = vunpack.c.l.b16 %v351
    %v444 = vunpack.c.h.b16 %v351
    %v445 = vunpack.c.l.b16 %v352
    %v446 = vunpack.c.h.b16 %v352
    %v447 = vunpack.c.l.b16 %v353
    %v448 = vunpack.c.h.b16 %v353
    %v449 = vunpack.c.l.b16 %v354
    %v450 = vunpack.c.h.b16 %v354
    %v451 = vunpack.c.l.b16 %v355
    %v452 = vunpack.c.h.b16 %v355
    %v453 = vunpack.c.l.b16 %v356
    %v454 = vunpack.c.h.b16 %v356
    %v455 = vunpack.c.l.b16 %v357
    %v456 = vunpack.c.h.b16 %v357
    %v457 = vunpack.c.l.b16 %v358
    %v458 = vunpack.c.h.b16 %v358
    %v459 = vunpack.c.l.b16 %v359
    %v460 = vunpack.c.h.b16 %v359
    %v461 = vunpack.c.l.b16 %v360
    %v462 = vunpack.c.h.b16 %v360
    %v463 = vpack.c.b16 %v401, %v399
    %v464 = vpack.c.b16 %v402, %v400
    %v465 = vpack.c.b16 %v405, %v403
    %v466 = vpack.c.b16 %v406, %v404
    %v467 = vpack.c.b16 %v409, %v407
    %v468 = vpack.c.b16 %v410, %v408
    %v469 = vpack.c.b16 %v413, %v411
    %v470 = vpack.c.b16 %v414, %v412
    %v471 = vpack.c.b16 %v417, %v415
    %v472 = vpack.c.b16 %v418, %v416
    %v473 = vpack.c.b16 %v421, %v419
    %v474 = vpack.c.b16 %v422, %v420
    %v475 = vpack.c.b16 %v425, %v423
    %v476 = vpack.c.b16 %v426, %v424
    %v477 = vpack.c.b16 %v429, %v427
    %v478 = vpack.c.b16 %v430, %v428
    %v479 = vpack.c.b16 %v433, %v431
    %v480 = vpack.c.b16 %v434, %v432
    %v481 = vpack.c.b16 %v437, %v435
    %v482 = vpack.c.b16 %v438, %v436
    %v483 = vpack.c.b16 %v441, %v439
    %v484 = vpack.c.b16 %v442, %v440
    %v485 = vpack.c.b16 %v445, %v443
    %v486 = vpack.c.b16 %v446, %v444
    %v487 = vpack.c.b16 %v449, %v447
    %v488 = vpack.c.b16 %v450, %v448
    %v489 = vpack.c.b16 %v453, %v451
    %v490 = vpack.c.b16 %v454, %v452
    %v491 = vpack.c.b16 %v457, %v455
    %v492 = vpack.c.b16 %v458, %v456
    %v493 = vpack.c.b16 %v461, %v459
    %v494 = vpack.c.b16 %v462, %v460
    %527 = vmatpush.bf16.msra.mxu0 %v477
    %528 = vmatpush.bf16.msra.mxu0 %v475
    %529 = vmatpush.bf16.msra.mxu0 %v473
    %530 = vmatpush.bf16.msra.mxu0 %v471
    %531 = vmatpush.bf16.msra.mxu0 %v469
    %532 = vmatpush.bf16.msra.mxu0 %v467
    %533 = vmatpush.bf16.msra.mxu0 %v465
    %534 = vmatpush.bf16.msra.mxu0 %v463
    %535 = vmatmul.bf16.gmra.mxu0 %v327
    %v536 = vpop.f32.mrf.mxu0
    %v537 = vadd.f32 %v363, %v536
    %v538 = vpop.f32.mrf.mxu0
    %539 = vdwg.mxu0
    %540 = vmatpush.bf16.msra.mxu0 %v493
    %541 = vmatpush.bf16.msra.mxu0 %v491
    %542 = vmatpush.bf16.msra.mxu0 %v489
    %543 = vmatpush.bf16.msra.mxu0 %v487
    %544 = vmatpush.bf16.msra.mxu0 %v485
    %545 = vmatpush.bf16.msra.mxu0 %v483
    %546 = vmatpush.bf16.msra.mxu0 %v481
    %547 = vmatpush.bf16.msra.mxu0 %v479
    %548 = vmatmul.bf16.gmra.mxu0 %v328
    %v549 = vpop.f32.mrf.mxu0
    %v550 = vadd.f32 %v537, %v549
    %v551 = vpop.f32.mrf.mxu0
    %552 = vdwg.mxu0
    %553 = vmatpush.bf16.msra.mxu0 %v478
    %554 = vmatpush.bf16.msra.mxu0 %v476
    %555 = vmatpush.bf16.msra.mxu0 %v474
    %556 = vmatpush.bf16.msra.mxu0 %v472
    %557 = vmatpush.bf16.msra.mxu0 %v470
    %558 = vmatpush.bf16.msra.mxu0 %v468
    %559 = vmatpush.bf16.msra.mxu0 %v466
    %560 = vmatpush.bf16.msra.mxu0 %v464
    %561 = vmatmul.bf16.gmra.mxu0 %v327
    %v562 = vpop.f32.mrf.mxu0
    %v563 = vadd.f32 %v364, %v562
    %v564 = vpop.f32.mrf.mxu0
    %565 = vdwg.mxu0
    %566 = vmatpush.bf16.msra.mxu0 %v494
    %567 = vmatpush.bf16.msra.mxu0 %v492
    %568 = vmatpush.bf16.msra.mxu0 %v490
    %569 = vmatpush.bf16.msra.mxu0 %v488
    %570 = vmatpush.bf16.msra.mxu0 %v486
    %571 = vmatpush.bf16.msra.mxu0 %v484
    %572 = vmatpush.bf16.msra.mxu0 %v482
    %573 = vmatpush.bf16.msra.mxu0 %v480
    %574 = vmatmul.bf16.gmra.mxu0 %v328
    %v575 = vpop.f32.mrf.mxu0
    %v576 = vadd.f32 %v563, %v575
    %v577 = vpop.f32.mrf.mxu0
    %578 = vdwg.mxu0
    %v579 = vmax.f32 %v550, 0.0
    %v580 = vmax.f32 %v576, 0.0
    %v581 = vpack.c.bf16 %v579, %v579
    %v582 = vpack.c.bf16 %v580, %v580
    %v583 = vld [vmem:[#allocation9] sm:$0xff]
    %v584 = vld [vmem:[#allocation9 + $0x8] sm:$0xff]
    %v585 = vld [vmem:[#allocation9 + $0x10] sm:$0xff]
    %v586 = vld [vmem:[#allocation9 + $0x18] sm:$0xff]
    %v587 = vld [vmem:[#allocation9 + $0x20] sm:$0xff]
    %v588 = vld [vmem:[#allocation9 + $0x28] sm:$0xff]
    %v589 = vld [vmem:[#allocation9 + $0x30] sm:$0xff]
    %v590 = vld [vmem:[#allocation9 + $0x38] sm:$0xff]
    %v591 = vld [vmem:[#allocation9 + $0x40] sm:$0xff]
    %v592 = vld [vmem:[#allocation9 + $0x48] sm:$0xff]
    %v593 = vld [vmem:[#allocation9 + $0x50] sm:$0xff]
    %v594 = vld [vmem:[#allocation9 + $0x58] sm:$0xff]
    %v595 = vld [vmem:[#allocation9 + $0x60] sm:$0xff]
    %v596 = vld [vmem:[#allocation9 + $0x68] sm:$0xff]
    %v597 = vld [vmem:[#allocation9 + $0x70] sm:$0xff]
    %v598 = vld [vmem:[#allocation9 + $0x78] sm:$0xff]
    %v599 = vld [vmem:[#allocation9 + $0x80] sm:$0xff]
    %v600 = vld [vmem:[#allocation9 + $0x88] sm:$0xff]
    %v601 = vld [vmem:[#allocation9 + $0x90] sm:$0xff]
    %v602 = vld [vmem:[#allocation9 + $0x98] sm:$0xff]
    %v603 = vld [vmem:[#allocation9 + $0xa0] sm:$0xff]
    %v604 = vld [vmem:[#allocation9 + $0xa8] sm:$0xff]
    %v605 = vld [vmem:[#allocation9 + $0xb0] sm:$0xff]
    %v606 = vld [vmem:[#allocation9 + $0xb8] sm:$0xff]
    %v607 = vld [vmem:[#allocation9 + $0xc0] sm:$0xff]
    %v608 = vld [vmem:[#allocation9 + $0xc8] sm:$0xff]
    %v609 = vld [vmem:[#allocation9 + $0xd0] sm:$0xff]
    %v610 = vld [vmem:[#allocation9 + $0xd8] sm:$0xff]
    %v611 = vld [vmem:[#allocation9 + $0xe0] sm:$0xff]
    %v612 = vld [vmem:[#allocation9 + $0xe8] sm:$0xff]
    %v613 = vld [vmem:[#allocation9 + $0xf0] sm:$0xff]
    %v614 = vld [vmem:[#allocation9 + $0xf8] sm:$0xff]
    %v615 = vld [vmem:[%s6] sm:$0x3]
    %v617 = vperm.slane %v615, 0
    %v618 = vperm.slane %v615, 1
    %v653 = vunpack.c.l.b16 %v583
    %v654 = vunpack.c.h.b16 %v583
    %v655 = vunpack.c.l.b16 %v584
    %v656 = vunpack.c.h.b16 %v584
    %v657 = vunpack.c.l.b16 %v585
    %v658 = vunpack.c.h.b16 %v585
    %v659 = vunpack.c.l.b16 %v586
    %v660 = vunpack.c.h.b16 %v586
    %v661 = vunpack.c.l.b16 %v587
    %v662 = vunpack.c.h.b16 %v587
    %v663 = vunpack.c.l.b16 %v588
    %v664 = vunpack.c.h.b16 %v588
    %v665 = vunpack.c.l.b16 %v589
    %v666 = vunpack.c.h.b16 %v589
    %v667 = vunpack.c.l.b16 %v590
    %v668 = vunpack.c.h.b16 %v590
    %v669 = vunpack.c.l.b16 %v591
    %v670 = vunpack.c.h.b16 %v591
    %v671 = vunpack.c.l.b16 %v592
    %v672 = vunpack.c.h.b16 %v592
    %v673 = vunpack.c.l.b16 %v593
    %v674 = vunpack.c.h.b16 %v593
    %v675 = vunpack.c.l.b16 %v594
    %v676 = vunpack.c.h.b16 %v594
    %v677 = vunpack.c.l.b16 %v595
    %v678 = vunpack.c.h.b16 %v595
    %v679 = vunpack.c.l.b16 %v596
    %v680 = vunpack.c.h.b16 %v596
    %v681 = vunpack.c.l.b16 %v597
    %v682 = vunpack.c.h.b16 %v597
    %v683 = vunpack.c.l.b16 %v598
    %v684 = vunpack.c.h.b16 %v598
    %v685 = vunpack.c.l.b16 %v599
    %v686 = vunpack.c.h.b16 %v599
    %v687 = vunpack.c.l.b16 %v600
    %v688 = vunpack.c.h.b16 %v600
    %v689 = vunpack.c.l.b16 %v601
    %v690 = vunpack.c.h.b16 %v601
    %v691 = vunpack.c.l.b16 %v602
    %v692 = vunpack.c.h.b16 %v602
    %v693 = vunpack.c.l.b16 %v603
    %v694 = vunpack.c.h.b16 %v603
    %v695 = vunpack.c.l.b16 %v604
    %v696 = vunpack.c.h.b16 %v604
    %v697 = vunpack.c.l.b16 %v605
    %v698 = vunpack.c.h.b16 %v605
    %v699 = vunpack.c.l.b16 %v606
    %v700 = vunpack.c.h.b16 %v606
    %v701 = vunpack.c.l.b16 %v607
    %v702 = vunpack.c.h.b16 %v607
    %v703 = vunpack.c.l.b16 %v608
    %v704 = vunpack.c.h.b16 %v608
    %v705 = vunpack.c.l.b16 %v609
    %v706 = vunpack.c.h.b16 %v609
    %v707 = vunpack.c.l.b16 %v610
    %v708 = vunpack.c.h.b16 %v610
    %v709 = vunpack.c.l.b16 %v611
    %v710 = vunpack.c.h.b16 %v611
    %v711 = vunpack.c.l.b16 %v612
    %v712 = vunpack.c.h.b16 %v612
    %v713 = vunpack.c.l.b16 %v613
    %v714 = vunpack.c.h.b16 %v613
    %v715 = vunpack.c.l.b16 %v614
    %v716 = vunpack.c.h.b16 %v614
    %v717 = vpack.c.b16 %v655, %v653
    %v718 = vpack.c.b16 %v656, %v654
    %v719 = vpack.c.b16 %v659, %v657
    %v720 = vpack.c.b16 %v660, %v658
    %v721 = vpack.c.b16 %v663, %v661
    %v722 = vpack.c.b16 %v664, %v662
    %v723 = vpack.c.b16 %v667, %v665
    %v724 = vpack.c.b16 %v668, %v666
    %v725 = vpack.c.b16 %v671, %v669
    %v726 = vpack.c.b16 %v672, %v670
    %v727 = vpack.c.b16 %v675, %v673
    %v728 = vpack.c.b16 %v676, %v674
    %v729 = vpack.c.b16 %v679, %v677
    %v730 = vpack.c.b16 %v680, %v678
    %v731 = vpack.c.b16 %v683, %v681
    %v732 = vpack.c.b16 %v684, %v682
    %v733 = vpack.c.b16 %v687, %v685
    %v734 = vpack.c.b16 %v688, %v686
    %v735 = vpack.c.b16 %v691, %v689
    %v736 = vpack.c.b16 %v692, %v690
    %v737 = vpack.c.b16 %v695, %v693
    %v738 = vpack.c.b16 %v696, %v694
    %v739 = vpack.c.b16 %v699, %v697
    %v740 = vpack.c.b16 %v700, %v698
    %v741 = vpack.c.b16 %v703, %v701
    %v742 = vpack.c.b16 %v704, %v702
    %v743 = vpack.c.b16 %v707, %v705
    %v744 = vpack.c.b16 %v708, %v706
    %v745 = vpack.c.b16 %v711, %v709
    %v746 = vpack.c.b16 %v712, %v710
    %v747 = vpack.c.b16 %v715, %v713
    %v748 = vpack.c.b16 %v716, %v714
    %781 = vmatpush.bf16.msra.mxu0 %v731
    %782 = vmatpush.bf16.msra.mxu0 %v729
    %783 = vmatpush.bf16.msra.mxu0 %v727
    %784 = vmatpush.bf16.msra.mxu0 %v725
    %785 = vmatpush.bf16.msra.mxu0 %v723
    %786 = vmatpush.bf16.msra.mxu0 %v721
    %787 = vmatpush.bf16.msra.mxu0 %v719
    %788 = vmatpush.bf16.msra.mxu0 %v717
    %789 = vmatmul.bf16.gmra.mxu0 %v581
    %v790 = vpop.f32.mrf.mxu0
    %v791 = vadd.f32 %v617, %v790
    %v792 = vpop.f32.mrf.mxu0
    %793 = vdwg.mxu0
    %794 = vmatpush.bf16.msra.mxu0 %v747
    %795 = vmatpush.bf16.msra.mxu0 %v745
    %796 = vmatpush.bf16.msra.mxu0 %v743
    %797 = vmatpush.bf16.msra.mxu0 %v741
    %798 = vmatpush.bf16.msra.mxu0 %v739
    %799 = vmatpush.bf16.msra.mxu0 %v737
    %800 = vmatpush.bf16.msra.mxu0 %v735
    %801 = vmatpush.bf16.msra.mxu0 %v733
    %802 = vmatmul.bf16.gmra.mxu0 %v582
    %v803 = vpop.f32.mrf.mxu0
    %v804 = vadd.f32 %v791, %v803
    %v805 = vpop.f32.mrf.mxu0
    %806 = vdwg.mxu0
    %807 = vmatpush.bf16.msra.mxu0 %v732
    %808 = vmatpush.bf16.msra.mxu0 %v730
    %809 = vmatpush.bf16.msra.mxu0 %v728
    %810 = vmatpush.bf16.msra.mxu0 %v726
    %811 = vmatpush.bf16.msra.mxu0 %v724
    %812 = vmatpush.bf16.msra.mxu0 %v722
    %813 = vmatpush.bf16.msra.mxu0 %v720
    %814 = vmatpush.bf16.msra.mxu0 %v718
    %815 = vmatmul.bf16.gmra.mxu0 %v581
    %v816 = vpop.f32.mrf.mxu0
    %v817 = vadd.f32 %v618, %v816
    %v818 = vpop.f32.mrf.mxu0
    %819 = vdwg.mxu0
    %820 = vmatpush.bf16.msra.mxu0 %v748
    %821 = vmatpush.bf16.msra.mxu0 %v746
    %822 = vmatpush.bf16.msra.mxu0 %v744
    %823 = vmatpush.bf16.msra.mxu0 %v742
    %824 = vmatpush.bf16.msra.mxu0 %v740
    %825 = vmatpush.bf16.msra.mxu0 %v738
    %826 = vmatpush.bf16.msra.mxu0 %v736
    %827 = vmatpush.bf16.msra.mxu0 %v734
    %828 = vmatmul.bf16.gmra.mxu0 %v582
    %v829 = vpop.f32.mrf.mxu0
    %v830 = vadd.f32 %v817, %v829
    %v831 = vpop.f32.mrf.mxu0
    %832 = vdwg.mxu0
    %v833 = vmax.f32 %v804, 0.0
    %v834 = vmax.f32 %v830, 0.0
    %v835 = vpack.c.bf16 %v833, %v833
    %v836 = vpack.c.bf16 %v834, %v834
    %v837 = vld [vmem:[#allocation11] sm:$0xf]
    %v838 = vld [vmem:[#allocation11 + $0x4] sm:$0xf]
    %v839 = vld [vmem:[#allocation11 + $0x8] sm:$0xf]
    %v840 = vld [vmem:[#allocation11 + $0xc] sm:$0xf]
    %v841 = vld [vmem:[#allocation11 + $0x10] sm:$0xf]
    %v842 = vld [vmem:[#allocation11 + $0x14] sm:$0xf]
    %v843 = vld [vmem:[#allocation11 + $0x18] sm:$0xf]
    %v844 = vld [vmem:[#allocation11 + $0x1c] sm:$0xf]
    %v845 = vld [vmem:[#allocation11 + $0x20] sm:$0xf]
    %v846 = vld [vmem:[#allocation11 + $0x24] sm:$0xf]
    %v847 = vld [vmem:[#allocation11 + $0x28] sm:$0xf]
    %v848 = vld [vmem:[#allocation11 + $0x2c] sm:$0xf]
    %v849 = vld [vmem:[#allocation11 + $0x30] sm:$0xf]
    %v850 = vld [vmem:[#allocation11 + $0x34] sm:$0xf]
    %v851 = vld [vmem:[#allocation11 + $0x38] sm:$0xf]
    %v852 = vld [vmem:[#allocation11 + $0x3c] sm:$0xf]
    %v853 = vld [vmem:[#allocation11 + $0x40] sm:$0xf]
    %v854 = vld [vmem:[#allocation11 + $0x44] sm:$0xf]
    %v855 = vld [vmem:[#allocation11 + $0x48] sm:$0xf]
    %v856 = vld [vmem:[#allocation11 + $0x4c] sm:$0xf]
    %v857 = vld [vmem:[#allocation11 + $0x50] sm:$0xf]
    %v858 = vld [vmem:[#allocation11 + $0x54] sm:$0xf]
    %v859 = vld [vmem:[#allocation11 + $0x58] sm:$0xf]
    %v860 = vld [vmem:[#allocation11 + $0x5c] sm:$0xf]
    %v861 = vld [vmem:[#allocation11 + $0x60] sm:$0xf]
    %v862 = vld [vmem:[#allocation11 + $0x64] sm:$0xf]
    %v863 = vld [vmem:[#allocation11 + $0x68] sm:$0xf]
    %v864 = vld [vmem:[#allocation11 + $0x6c] sm:$0xf]
    %v865 = vld [vmem:[#allocation11 + $0x70] sm:$0xf]
    %v866 = vld [vmem:[#allocation11 + $0x74] sm:$0xf]
    %v867 = vld [vmem:[#allocation11 + $0x78] sm:$0xf]
    %v868 = vld [vmem:[#allocation11 + $0x7c] sm:$0xf]
    %v869 = vld [vmem:[#allocation12] sm:$0x1]
    %v871 = vperm.slane %v869, 0
    %v905 = vunpack.c.l.b16 %v837
    %v906 = vunpack.c.l.b16 %v838
    %v907 = vunpack.c.l.b16 %v839
    %v908 = vunpack.c.l.b16 %v840
    %v909 = vunpack.c.l.b16 %v841
    %v910 = vunpack.c.l.b16 %v842
    %v911 = vunpack.c.l.b16 %v843
    %v912 = vunpack.c.l.b16 %v844
    %v913 = vunpack.c.l.b16 %v845
    %v914 = vunpack.c.l.b16 %v846
    %v915 = vunpack.c.l.b16 %v847
    %v916 = vunpack.c.l.b16 %v848
    %v917 = vunpack.c.l.b16 %v849
    %v918 = vunpack.c.l.b16 %v850
    %v919 = vunpack.c.l.b16 %v851
    %v920 = vunpack.c.l.b16 %v852
    %v921 = vunpack.c.l.b16 %v853
    %v922 = vunpack.c.l.b16 %v854
    %v923 = vunpack.c.l.b16 %v855
    %v924 = vunpack.c.l.b16 %v856
    %v925 = vunpack.c.l.b16 %v857
    %v926 = vunpack.c.l.b16 %v858
    %v927 = vunpack.c.l.b16 %v859
    %v928 = vunpack.c.l.b16 %v860
    %v929 = vunpack.c.l.b16 %v861
    %v930 = vunpack.c.l.b16 %v862
    %v931 = vunpack.c.l.b16 %v863
    %v932 = vunpack.c.l.b16 %v864
    %v933 = vunpack.c.l.b16 %v865
    %v934 = vunpack.c.l.b16 %v866
    %v935 = vunpack.c.l.b16 %v867
    %v936 = vunpack.c.l.b16 %v868
    %v937 = vpack.c.b16 %v906, %v905
    %v938 = vpack.c.b16 %v908, %v907
    %v939 = vpack.c.b16 %v910, %v909
    %v940 = vpack.c.b16 %v912, %v911
    %v941 = vpack.c.b16 %v914, %v913
    %v942 = vpack.c.b16 %v916, %v915
    %v943 = vpack.c.b16 %v918, %v917
    %v944 = vpack.c.b16 %v920, %v919
    %v945 = vpack.c.b16 %v922, %v921
    %v946 = vpack.c.b16 %v924, %v923
    %v947 = vpack.c.b16 %v926, %v925
    %v948 = vpack.c.b16 %v928, %v927
    %v949 = vpack.c.b16 %v930, %v929
    %v950 = vpack.c.b16 %v932, %v931
    %v951 = vpack.c.b16 %v934, %v933
    %v952 = vpack.c.b16 %v936, %v935
    %969 = vmatpush.bf16.msra.mxu0 %v944
    %970 = vmatpush.bf16.msra.mxu0 %v943
    %971 = vmatpush.bf16.msra.mxu0 %v942
    %972 = vmatpush.bf16.msra.mxu0 %v941
    %973 = vmatpush.bf16.msra.mxu0 %v940
    %974 = vmatpush.bf16.msra.mxu0 %v939
    %975 = vmatpush.bf16.msra.mxu0 %v938
    %976 = vmatpush.bf16.msra.mxu0 %v937
    %977 = vmatmul.bf16.gmra.mxu0 %v835
    %v978 = vpop.f32.mrf.mxu0
    %v979 = vadd.f32 %v871, %v978
    %v980 = vpop.f32.mrf.mxu0
    %981 = vdwg.mxu0
    %982 = vmatpush.bf16.msra.mxu0 %v952
    %983 = vmatpush.bf16.msra.mxu0 %v951
    %984 = vmatpush.bf16.msra.mxu0 %v950
    %985 = vmatpush.bf16.msra.mxu0 %v949
    %986 = vmatpush.bf16.msra.mxu0 %v948
    %987 = vmatpush.bf16.msra.mxu0 %v947
    %988 = vmatpush.bf16.msra.mxu0 %v946
    %989 = vmatpush.bf16.msra.mxu0 %v945
    %990 = vmatmul.bf16.gmra.mxu0 %v836
    %v991 = vpop.f32.mrf.mxu0
    %v992 = vadd.f32 %v979, %v991
    %v993 = vpop.f32.mrf.mxu0
    %994 = vdwg.mxu0
    %v995 = vtanh.pop %v992
    %v996 = vpack.c.bf16 %v995, %v995
    %v997 = vld [vmem:[#allocation14] sm:$0xff]
    %v998 = vld [vmem:[#allocation14 + $0x8] sm:$0xff]
    %v999 = vld [vmem:[#allocation14 + $0x10] sm:$0xff]
    %v1000 = vld [vmem:[#allocation14 + $0x18] sm:$0xff]
    %v1001 = vld [vmem:[#allocation14 + $0x20] sm:$0xff]
    %v1002 = vld [vmem:[#allocation14 + $0x28] sm:$0xff]
    %v1003 = vld [vmem:[#allocation14 + $0x30] sm:$0xff]
    %v1004 = vld [vmem:[#allocation14 + $0x38] sm:$0xff]
    %v1005 = vld [vmem:[#allocation14 + $0x40] sm:$0xff]
    %v1006 = vld [vmem:[#allocation14 + $0x48] sm:$0xff]
    %v1007 = vld [vmem:[#allocation14 + $0x50] sm:$0xff]
    %v1008 = vld [vmem:[#allocation14 + $0x58] sm:$0xff]
    %v1009 = vld [vmem:[#allocation14 + $0x60] sm:$0xff]
    %v1010 = vld [vmem:[#allocation14 + $0x68] sm:$0xff]
    %v1011 = vld [vmem:[#allocation14 + $0x70] sm:$0xff]
    %v1012 = vld [vmem:[#allocation14 + $0x78] sm:$0xff]
    %v1013 = vld [vmem:[#allocation14 + $0x80] sm:$0xff]
    %v1014 = vld [vmem:[#allocation14 + $0x88] sm:$0xff]
    %v1015 = vld [vmem:[#allocation14 + $0x90] sm:$0xff]
    %v1016 = vld [vmem:[#allocation14 + $0x98] sm:$0xff]
    %v1017 = vld [vmem:[#allocation14 + $0xa0] sm:$0xff]
    %v1018 = vld [vmem:[#allocation14 + $0xa8] sm:$0xff]
    %v1019 = vld [vmem:[#allocation14 + $0xb0] sm:$0xff]
    %v1020 = vld [vmem:[#allocation14 + $0xb8] sm:$0xff]
    %v1021 = vld [vmem:[#allocation14 + $0xc0] sm:$0xff]
    %v1022 = vld [vmem:[#allocation14 + $0xc8] sm:$0xff]
    %v1023 = vld [vmem:[#allocation14 + $0xd0] sm:$0xff]
    %v1024 = vld [vmem:[#allocation14 + $0xd8] sm:$0xff]
    %v1025 = vld [vmem:[#allocation14 + $0xe0] sm:$0xff]
    %v1026 = vld [vmem:[#allocation14 + $0xe8] sm:$0xff]
    %v1027 = vld [vmem:[#allocation14 + $0xf0] sm:$0xff]
    %v1028 = vld [vmem:[#allocation14 + $0xf8] sm:$0xff]
    %v1029 = vld [vmem:[%s10] sm:$0x3]
    %v1031 = vperm.slane %v1029, 0
    %v1032 = vperm.slane %v1029, 1
    %v1067 = vunpack.c.l.b16 %v997
    %v1068 = vunpack.c.h.b16 %v997
    %v1069 = vunpack.c.l.b16 %v998
    %v1070 = vunpack.c.h.b16 %v998
    %v1071 = vunpack.c.l.b16 %v999
    %v1072 = vunpack.c.h.b16 %v999
    %v1073 = vunpack.c.l.b16 %v1000
    %v1074 = vunpack.c.h.b16 %v1000
    %v1075 = vunpack.c.l.b16 %v1001
    %v1076 = vunpack.c.h.b16 %v1001
    %v1077 = vunpack.c.l.b16 %v1002
    %v1078 = vunpack.c.h.b16 %v1002
    %v1079 = vunpack.c.l.b16 %v1003
    %v1080 = vunpack.c.h.b16 %v1003
    %v1081 = vunpack.c.l.b16 %v1004
    %v1082 = vunpack.c.h.b16 %v1004
    %v1083 = vunpack.c.l.b16 %v1005
    %v1084 = vunpack.c.h.b16 %v1005
    %v1085 = vunpack.c.l.b16 %v1006
    %v1086 = vunpack.c.h.b16 %v1006
    %v1087 = vunpack.c.l.b16 %v1007
    %v1088 = vunpack.c.h.b16 %v1007
    %v1089 = vunpack.c.l.b16 %v1008
    %v1090 = vunpack.c.h.b16 %v1008
    %v1091 = vunpack.c.l.b16 %v1009
    %v1092 = vunpack.c.h.b16 %v1009
    %v1093 = vunpack.c.l.b16 %v1010
    %v1094 = vunpack.c.h.b16 %v1010
    %v1095 = vunpack.c.l.b16 %v1011
    %v1096 = vunpack.c.h.b16 %v1011
    %v1097 = vunpack.c.l.b16 %v1012
    %v1098 = vunpack.c.h.b16 %v1012
    %v1099 = vunpack.c.l.b16 %v1013
    %v1100 = vunpack.c.h.b16 %v1013
    %v1101 = vunpack.c.l.b16 %v1014
    %v1102 = vunpack.c.h.b16 %v1014
    %v1103 = vunpack.c.l.b16 %v1015
    %v1104 = vunpack.c.h.b16 %v1015
    %v1105 = vunpack.c.l.b16 %v1016
    %v1106 = vunpack.c.h.b16 %v1016
    %v1107 = vunpack.c.l.b16 %v1017
    %v1108 = vunpack.c.h.b16 %v1017
    %v1109 = vunpack.c.l.b16 %v1018
    %v1110 = vunpack.c.h.b16 %v1018
    %v1111 = vunpack.c.l.b16 %v1019
    %v1112 = vunpack.c.h.b16 %v1019
    %v1113 = vunpack.c.l.b16 %v1020
    %v1114 = vunpack.c.h.b16 %v1020
    %v1115 = vunpack.c.l.b16 %v1021
    %v1116 = vunpack.c.h.b16 %v1021
    %v1117 = vunpack.c.l.b16 %v1022
    %v1118 = vunpack.c.h.b16 %v1022
    %v1119 = vunpack.c.l.b16 %v1023
    %v1120 = vunpack.c.h.b16 %v1023
    %v1121 = vunpack.c.l.b16 %v1024
    %v1122 = vunpack.c.h.b16 %v1024
    %v1123 = vunpack.c.l.b16 %v1025
    %v1124 = vunpack.c.h.b16 %v1025
    %v1125 = vunpack.c.l.b16 %v1026
    %v1126 = vunpack.c.h.b16 %v1026
    %v1127 = vunpack.c.l.b16 %v1027
    %v1128 = vunpack.c.h.b16 %v1027
    %v1129 = vunpack.c.l.b16 %v1028
    %v1130 = vunpack.c.h.b16 %v1028
    %v1131 = vpack.c.b16 %v1069, %v1067
    %v1132 = vpack.c.b16 %v1070, %v1068
    %v1133 = vpack.c.b16 %v1073, %v1071
    %v1134 = vpack.c.b16 %v1074, %v1072
    %v1135 = vpack.c.b16 %v1077, %v1075
    %v1136 = vpack.c.b16 %v1078, %v1076
    %v1137 = vpack.c.b16 %v1081, %v1079
    %v1138 = vpack.c.b16 %v1082, %v1080
    %v1139 = vpack.c.b16 %v1085, %v1083
    %v1140 = vpack.c.b16 %v1086, %v1084
    %v1141 = vpack.c.b16 %v1089, %v1087
    %v1142 = vpack.c.b16 %v1090, %v1088
    %v1143 = vpack.c.b16 %v1093, %v1091
    %v1144 = vpack.c.b16 %v1094, %v1092
    %v1145 = vpack.c.b16 %v1097, %v1095
    %v1146 = vpack.c.b16 %v1098, %v1096
    %v1147 = vpack.c.b16 %v1101, %v1099
    %v1148 = vpack.c.b16 %v1102, %v1100
    %v1149 = vpack.c.b16 %v1105, %v1103
    %v1150 = vpack.c.b16 %v1106, %v1104
    %v1151 = vpack.c.b16 %v1109, %v1107
    %v1152 = vpack.c.b16 %v1110, %v1108
    %v1153 = vpack.c.b16 %v1113, %v1111
    %v1154 = vpack.c.b16 %v1114, %v1112
    %v1155 = vpack.c.b16 %v1117, %v1115
    %v1156 = vpack.c.b16 %v1118, %v1116
    %v1157 = vpack.c.b16 %v1121, %v1119
    %v1158 = vpack.c.b16 %v1122, %v1120
    %v1159 = vpack.c.b16 %v1125, %v1123
    %v1160 = vpack.c.b16 %v1126, %v1124
    %v1161 = vpack.c.b16 %v1129, %v1127
    %v1162 = vpack.c.b16 %v1130, %v1128
    %1195 = vmatpush.bf16.msra.mxu0 %v1145
    %1196 = vmatpush.bf16.msra.mxu0 %v1143
    %1197 = vmatpush.bf16.msra.mxu0 %v1141
    %1198 = vmatpush.bf16.msra.mxu0 %v1139
    %1199 = vmatpush.bf16.msra.mxu0 %v1137
    %1200 = vmatpush.bf16.msra.mxu0 %v1135
    %1201 = vmatpush.bf16.msra.mxu0 %v1133
    %1202 = vmatpush.bf16.msra.mxu0 %v1131
    %1203 = vmatmul.bf16.gmra.mxu0 %v196
    %v1204 = vpop.f32.mrf.mxu0
    %v1205 = vadd.f32 %v1031, %v1204
    %v1206 = vpop.f32.mrf.mxu0
    %1207 = vdwg.mxu0
    %1208 = vmatpush.bf16.msra.mxu0 %v1161
    %1209 = vmatpush.bf16.msra.mxu0 %v1159
    %1210 = vmatpush.bf16.msra.mxu0 %v1157
    %1211 = vmatpush.bf16.msra.mxu0 %v1155
    %1212 = vmatpush.bf16.msra.mxu0 %v1153
    %1213 = vmatpush.bf16.msra.mxu0 %v1151
    %1214 = vmatpush.bf16.msra.mxu0 %v1149
    %1215 = vmatpush.bf16.msra.mxu0 %v1147
    %1216 = vmatmul.bf16.gmra.mxu0 %v996
    %v1217 = vpop.f32.mrf.mxu0
    %v1218 = vadd.f32 %v1205, %v1217
    %v1219 = vpop.f32.mrf.mxu0
    %1220 = vdwg.mxu0
    %1221 = vmatpush.bf16.msra.mxu0 %v1146
    %1222 = vmatpush.bf16.msra.mxu0 %v1144
    %1223 = vmatpush.bf16.msra.mxu0 %v1142
    %1224 = vmatpush.bf16.msra.mxu0 %v1140
    %1225 = vmatpush.bf16.msra.mxu0 %v1138
    %1226 = vmatpush.bf16.msra.mxu0 %v1136
    %1227 = vmatpush.bf16.msra.mxu0 %v1134
    %1228 = vmatpush.bf16.msra.mxu0 %v1132
    %1229 = vmatmul.bf16.gmra.mxu0 %v196
    %v1230 = vpop.f32.mrf.mxu0
    %v1231 = vadd.f32 %v1032, %v1230
    %v1232 = vpop.f32.mrf.mxu0
    %1233 = vdwg.mxu0
    %1234 = vmatpush.bf16.msra.mxu0 %v1162
    %1235 = vmatpush.bf16.msra.mxu0 %v1160
    %1236 = vmatpush.bf16.msra.mxu0 %v1158
    %1237 = vmatpush.bf16.msra.mxu0 %v1156
    %1238 = vmatpush.bf16.msra.mxu0 %v1154
    %1239 = vmatpush.bf16.msra.mxu0 %v1152
    %1240 = vmatpush.bf16.msra.mxu0 %v1150
    %1241 = vmatpush.bf16.msra.mxu0 %v1148
    %1242 = vmatmul.bf16.gmra.mxu0 %v996
    %v1243 = vpop.f32.mrf.mxu0
    %v1244 = vadd.f32 %v1231, %v1243
    %v1245 = vpop.f32.mrf.mxu0
    %1246 = vdwg.mxu0
    %v1247 = vmax.f32 %v1218, 0.0
    %v1248 = vmax.f32 %v1244, 0.0
    %v1249 = vpack.c.bf16 %v1247, %v1247
    %v1250 = vpack.c.bf16 %v1248, %v1248
    %v1251 = vld [vmem:[#allocation15] sm:$0xff]
    %v1252 = vld [vmem:[#allocation15 + $0x8] sm:$0xff]
    %v1253 = vld [vmem:[#allocation15 + $0x10] sm:$0xff]
    %v1254 = vld [vmem:[#allocation15 + $0x18] sm:$0xff]
    %v1255 = vld [vmem:[#allocation15 + $0x20] sm:$0xff]
    %v1256 = vld [vmem:[#allocation15 + $0x28] sm:$0xff]
    %v1257 = vld [vmem:[#allocation15 + $0x30] sm:$0xff]
    %v1258 = vld [vmem:[#allocation15 + $0x38] sm:$0xff]
    %v1259 = vld [vmem:[#allocation15 + $0x40] sm:$0xff]
    %v1260 = vld [vmem:[#allocation15 + $0x48] sm:$0xff]
    %v1261 = vld [vmem:[#allocation15 + $0x50] sm:$0xff]
    %v1262 = vld [vmem:[#allocation15 + $0x58] sm:$0xff]
    %v1263 = vld [vmem:[#allocation15 + $0x60] sm:$0xff]
    %v1264 = vld [vmem:[#allocation15 + $0x68] sm:$0xff]
    %v1265 = vld [vmem:[#allocation15 + $0x70] sm:$0xff]
    %v1266 = vld [vmem:[#allocation15 + $0x78] sm:$0xff]
    %v1267 = vld [vmem:[#allocation15 + $0x80] sm:$0xff]
    %v1268 = vld [vmem:[#allocation15 + $0x88] sm:$0xff]
    %v1269 = vld [vmem:[#allocation15 + $0x90] sm:$0xff]
    %v1270 = vld [vmem:[#allocation15 + $0x98] sm:$0xff]
    %v1271 = vld [vmem:[#allocation15 + $0xa0] sm:$0xff]
    %v1272 = vld [vmem:[#allocation15 + $0xa8] sm:$0xff]
    %v1273 = vld [vmem:[#allocation15 + $0xb0] sm:$0xff]
    %v1274 = vld [vmem:[#allocation15 + $0xb8] sm:$0xff]
    %v1275 = vld [vmem:[#allocation15 + $0xc0] sm:$0xff]
    %v1276 = vld [vmem:[#allocation15 + $0xc8] sm:$0xff]
    %v1277 = vld [vmem:[#allocation15 + $0xd0] sm:$0xff]
    %v1278 = vld [vmem:[#allocation15 + $0xd8] sm:$0xff]
    %v1279 = vld [vmem:[#allocation15 + $0xe0] sm:$0xff]
    %v1280 = vld [vmem:[#allocation15 + $0xe8] sm:$0xff]
    %v1281 = vld [vmem:[#allocation15 + $0xf0] sm:$0xff]
    %v1282 = vld [vmem:[#allocation15 + $0xf8] sm:$0xff]
    %v1283 = vld [vmem:[%s12] sm:$0x3]
    %v1285 = vperm.slane %v1283, 0
    %v1286 = vperm.slane %v1283, 1
    %v1321 = vunpack.c.l.b16 %v1251
    %v1322 = vunpack.c.h.b16 %v1251
    %v1323 = vunpack.c.l.b16 %v1252
    %v1324 = vunpack.c.h.b16 %v1252
    %v1325 = vunpack.c.l.b16 %v1253
    %v1326 = vunpack.c.h.b16 %v1253
    %v1327 = vunpack.c.l.b16 %v1254
    %v1328 = vunpack.c.h.b16 %v1254
    %v1329 = vunpack.c.l.b16 %v1255
    %v1330 = vunpack.c.h.b16 %v1255
    %v1331 = vunpack.c.l.b16 %v1256
    %v1332 = vunpack.c.h.b16 %v1256
    %v1333 = vunpack.c.l.b16 %v1257
    %v1334 = vunpack.c.h.b16 %v1257
    %v1335 = vunpack.c.l.b16 %v1258
    %v1336 = vunpack.c.h.b16 %v1258
    %v1337 = vunpack.c.l.b16 %v1259
    %v1338 = vunpack.c.h.b16 %v1259
    %v1339 = vunpack.c.l.b16 %v1260
    %v1340 = vunpack.c.h.b16 %v1260
    %v1341 = vunpack.c.l.b16 %v1261
    %v1342 = vunpack.c.h.b16 %v1261
    %v1343 = vunpack.c.l.b16 %v1262
    %v1344 = vunpack.c.h.b16 %v1262
    %v1345 = vunpack.c.l.b16 %v1263
    %v1346 = vunpack.c.h.b16 %v1263
    %v1347 = vunpack.c.l.b16 %v1264
    %v1348 = vunpack.c.h.b16 %v1264
    %v1349 = vunpack.c.l.b16 %v1265
    %v1350 = vunpack.c.h.b16 %v1265
    %v1351 = vunpack.c.l.b16 %v1266
    %v1352 = vunpack.c.h.b16 %v1266
    %v1353 = vunpack.c.l.b16 %v1267
    %v1354 = vunpack.c.h.b16 %v1267
    %v1355 = vunpack.c.l.b16 %v1268
    %v1356 = vunpack.c.h.b16 %v1268
    %v1357 = vunpack.c.l.b16 %v1269
    %v1358 = vunpack.c.h.b16 %v1269
    %v1359 = vunpack.c.l.b16 %v1270
    %v1360 = vunpack.c.h.b16 %v1270
    %v1361 = vunpack.c.l.b16 %v1271
    %v1362 = vunpack.c.h.b16 %v1271
    %v1363 = vunpack.c.l.b16 %v1272
    %v1364 = vunpack.c.h.b16 %v1272
    %v1365 = vunpack.c.l.b16 %v1273
    %v1366 = vunpack.c.h.b16 %v1273
    %v1367 = vunpack.c.l.b16 %v1274
    %v1368 = vunpack.c.h.b16 %v1274
    %v1369 = vunpack.c.l.b16 %v1275
    %v1370 = vunpack.c.h.b16 %v1275
    %v1371 = vunpack.c.l.b16 %v1276
    %v1372 = vunpack.c.h.b16 %v1276
    %v1373 = vunpack.c.l.b16 %v1277
    %v1374 = vunpack.c.h.b16 %v1277
    %v1375 = vunpack.c.l.b16 %v1278
    %v1376 = vunpack.c.h.b16 %v1278
    %v1377 = vunpack.c.l.b16 %v1279
    %v1378 = vunpack.c.h.b16 %v1279
    %v1379 = vunpack.c.l.b16 %v1280
    %v1380 = vunpack.c.h.b16 %v1280
    %v1381 = vunpack.c.l.b16 %v1281
    %v1382 = vunpack.c.h.b16 %v1281
    %v1383 = vunpack.c.l.b16 %v1282
    %v1384 = vunpack.c.h.b16 %v1282
    %v1385 = vpack.c.b16 %v1323, %v1321
    %v1386 = vpack.c.b16 %v1324, %v1322
    %v1387 = vpack.c.b16 %v1327, %v1325
    %v1388 = vpack.c.b16 %v1328, %v1326
    %v1389 = vpack.c.b16 %v1331, %v1329
    %v1390 = vpack.c.b16 %v1332, %v1330
    %v1391 = vpack.c.b16 %v1335, %v1333
    %v1392 = vpack.c.b16 %v1336, %v1334
    %v1393 = vpack.c.b16 %v1339, %v1337
    %v1394 = vpack.c.b16 %v1340, %v1338
    %v1395 = vpack.c.b16 %v1343, %v1341
    %v1396 = vpack.c.b16 %v1344, %v1342
    %v1397 = vpack.c.b16 %v1347, %v1345
    %v1398 = vpack.c.b16 %v1348, %v1346
    %v1399 = vpack.c.b16 %v1351, %v1349
    %v1400 = vpack.c.b16 %v1352, %v1350
    %v1401 = vpack.c.b16 %v1355, %v1353
    %v1402 = vpack.c.b16 %v1356, %v1354
    %v1403 = vpack.c.b16 %v1359, %v1357
    %v1404 = vpack.c.b16 %v1360, %v1358
    %v1405 = vpack.c.b16 %v1363, %v1361
    %v1406 = vpack.c.b16 %v1364, %v1362
    %v1407 = vpack.c.b16 %v1367, %v1365
    %v1408 = vpack.c.b16 %v1368, %v1366
    %v1409 = vpack.c.b16 %v1371, %v1369
    %v1410 = vpack.c.b16 %v1372, %v1370
    %v1411 = vpack.c.b16 %v1375, %v1373
    %v1412 = vpack.c.b16 %v1376, %v1374
    %v1413 = vpack.c.b16 %v1379, %v1377
    %v1414 = vpack.c.b16 %v1380, %v1378
    %v1415 = vpack.c.b16 %v1383, %v1381
    %v1416 = vpack.c.b16 %v1384, %v1382
    %1449 = vmatpush.bf16.msra.mxu0 %v1399
    %1450 = vmatpush.bf16.msra.mxu0 %v1397
    %1451 = vmatpush.bf16.msra.mxu0 %v1395
    %1452 = vmatpush.bf16.msra.mxu0 %v1393
    %1453 = vmatpush.bf16.msra.mxu0 %v1391
    %1454 = vmatpush.bf16.msra.mxu0 %v1389
    %1455 = vmatpush.bf16.msra.mxu0 %v1387
    %1456 = vmatpush.bf16.msra.mxu0 %v1385
    %1457 = vmatmul.bf16.gmra.mxu0 %v1249
    %v1458 = vpop.f32.mrf.mxu0
    %v1459 = vadd.f32 %v1285, %v1458
    %v1460 = vpop.f32.mrf.mxu0
    %1461 = vdwg.mxu0
    %1462 = vmatpush.bf16.msra.mxu0 %v1415
    %1463 = vmatpush.bf16.msra.mxu0 %v1413
    %1464 = vmatpush.bf16.msra.mxu0 %v1411
    %1465 = vmatpush.bf16.msra.mxu0 %v1409
    %1466 = vmatpush.bf16.msra.mxu0 %v1407
    %1467 = vmatpush.bf16.msra.mxu0 %v1405
    %1468 = vmatpush.bf16.msra.mxu0 %v1403
    %1469 = vmatpush.bf16.msra.mxu0 %v1401
    %1470 = vmatmul.bf16.gmra.mxu0 %v1250
    %v1471 = vpop.f32.mrf.mxu0
    %v1472 = vadd.f32 %v1459, %v1471
    %v1473 = vpop.f32.mrf.mxu0
    %1474 = vdwg.mxu0
    %1475 = vmatpush.bf16.msra.mxu0 %v1400
    %1476 = vmatpush.bf16.msra.mxu0 %v1398
    %1477 = vmatpush.bf16.msra.mxu0 %v1396
    %1478 = vmatpush.bf16.msra.mxu0 %v1394
    %1479 = vmatpush.bf16.msra.mxu0 %v1392
    %1480 = vmatpush.bf16.msra.mxu0 %v1390
    %1481 = vmatpush.bf16.msra.mxu0 %v1388
    %1482 = vmatpush.bf16.msra.mxu0 %v1386
    %1483 = vmatmul.bf16.gmra.mxu0 %v1249
    %v1484 = vpop.f32.mrf.mxu0
    %v1485 = vadd.f32 %v1286, %v1484
    %v1486 = vpop.f32.mrf.mxu0
    %1487 = vdwg.mxu0
    %1488 = vmatpush.bf16.msra.mxu0 %v1416
    %1489 = vmatpush.bf16.msra.mxu0 %v1414
    %1490 = vmatpush.bf16.msra.mxu0 %v1412
    %1491 = vmatpush.bf16.msra.mxu0 %v1410
    %1492 = vmatpush.bf16.msra.mxu0 %v1408
    %1493 = vmatpush.bf16.msra.mxu0 %v1406
    %1494 = vmatpush.bf16.msra.mxu0 %v1404
    %1495 = vmatpush.bf16.msra.mxu0 %v1402
    %1496 = vmatmul.bf16.gmra.mxu0 %v1250
    %v1497 = vpop.f32.mrf.mxu0
    %v1498 = vadd.f32 %v1485, %v1497
    %v1499 = vpop.f32.mrf.mxu0
    %1500 = vdwg.mxu0
    %v1501 = vmax.f32 %v1472, 0.0
    %v1502 = vmax.f32 %v1498, 0.0
    %v1503 = vpack.c.bf16 %v1501, %v1501
    %v1504 = vpack.c.bf16 %v1502, %v1502
    %v1505 = vld [vmem:[#allocation17] sm:$0xff]
    %v1506 = vld [vmem:[#allocation17 + $0x8] sm:$0xff]
    %v1507 = vld [vmem:[#allocation17 + $0x10] sm:$0xff]
    %v1508 = vld [vmem:[#allocation17 + $0x18] sm:$0xff]
    %v1509 = vld [vmem:[#allocation17 + $0x20] sm:$0xff]
    %v1510 = vld [vmem:[#allocation17 + $0x28] sm:$0xff]
    %v1511 = vld [vmem:[#allocation17 + $0x30] sm:$0xff]
    %v1512 = vld [vmem:[#allocation17 + $0x38] sm:$0xff]
    %v1513 = vld [vmem:[#allocation17 + $0x40] sm:$0xff]
    %v1514 = vld [vmem:[#allocation17 + $0x48] sm:$0xff]
    %v1515 = vld [vmem:[#allocation17 + $0x50] sm:$0xff]
    %v1516 = vld [vmem:[#allocation17 + $0x58] sm:$0xff]
    %v1517 = vld [vmem:[#allocation17 + $0x60] sm:$0xff]
    %v1518 = vld [vmem:[#allocation17 + $0x68] sm:$0xff]
    %v1519 = vld [vmem:[#allocation17 + $0x70] sm:$0xff]
    %v1520 = vld [vmem:[#allocation17 + $0x78] sm:$0xff]
    %v1521 = vld [vmem:[#allocation17 + $0x80] sm:$0xff]
    %v1522 = vld [vmem:[#allocation17 + $0x88] sm:$0xff]
    %v1523 = vld [vmem:[#allocation17 + $0x90] sm:$0xff]
    %v1524 = vld [vmem:[#allocation17 + $0x98] sm:$0xff]
    %v1525 = vld [vmem:[#allocation17 + $0xa0] sm:$0xff]
    %v1526 = vld [vmem:[#allocation17 + $0xa8] sm:$0xff]
    %v1527 = vld [vmem:[#allocation17 + $0xb0] sm:$0xff]
    %v1528 = vld [vmem:[#allocation17 + $0xb8] sm:$0xff]
    %v1529 = vld [vmem:[#allocation17 + $0xc0] sm:$0xff]
    %v1530 = vld [vmem:[#allocation17 + $0xc8] sm:$0xff]
    %v1531 = vld [vmem:[#allocation17 + $0xd0] sm:$0xff]
    %v1532 = vld [vmem:[#allocation17 + $0xd8] sm:$0xff]
    %v1533 = vld [vmem:[#allocation17 + $0xe0] sm:$0xff]
    %v1534 = vld [vmem:[#allocation17 + $0xe8] sm:$0xff]
    %v1535 = vld [vmem:[#allocation17 + $0xf0] sm:$0xff]
    %v1536 = vld [vmem:[#allocation17 + $0xf8] sm:$0xff]
    %v1537 = vld [vmem:[%s14] sm:$0x3]
    %v1539 = vperm.slane %v1537, 0
    %v1540 = vperm.slane %v1537, 1
    %v1575 = vunpack.c.l.b16 %v1505
    %v1576 = vunpack.c.h.b16 %v1505
    %v1577 = vunpack.c.l.b16 %v1506
    %v1578 = vunpack.c.h.b16 %v1506
    %v1579 = vunpack.c.l.b16 %v1507
    %v1580 = vunpack.c.h.b16 %v1507
    %v1581 = vunpack.c.l.b16 %v1508
    %v1582 = vunpack.c.h.b16 %v1508
    %v1583 = vunpack.c.l.b16 %v1509
    %v1584 = vunpack.c.h.b16 %v1509
    %v1585 = vunpack.c.l.b16 %v1510
    %v1586 = vunpack.c.h.b16 %v1510
    %v1587 = vunpack.c.l.b16 %v1511
    %v1588 = vunpack.c.h.b16 %v1511
    %v1589 = vunpack.c.l.b16 %v1512
    %v1590 = vunpack.c.h.b16 %v1512
    %v1591 = vunpack.c.l.b16 %v1513
    %v1592 = vunpack.c.h.b16 %v1513
    %v1593 = vunpack.c.l.b16 %v1514
    %v1594 = vunpack.c.h.b16 %v1514
    %v1595 = vunpack.c.l.b16 %v1515
    %v1596 = vunpack.c.h.b16 %v1515
    %v1597 = vunpack.c.l.b16 %v1516
    %v1598 = vunpack.c.h.b16 %v1516
    %v1599 = vunpack.c.l.b16 %v1517
    %v1600 = vunpack.c.h.b16 %v1517
    %v1601 = vunpack.c.l.b16 %v1518
    %v1602 = vunpack.c.h.b16 %v1518
    %v1603 = vunpack.c.l.b16 %v1519
    %v1604 = vunpack.c.h.b16 %v1519
    %v1605 = vunpack.c.l.b16 %v1520
    %v1606 = vunpack.c.h.b16 %v1520
    %v1607 = vunpack.c.l.b16 %v1521
    %v1608 = vunpack.c.h.b16 %v1521
    %v1609 = vunpack.c.l.b16 %v1522
    %v1610 = vunpack.c.h.b16 %v1522
    %v1611 = vunpack.c.l.b16 %v1523
    %v1612 = vunpack.c.h.b16 %v1523
    %v1613 = vunpack.c.l.b16 %v1524
    %v1614 = vunpack.c.h.b16 %v1524
    %v1615 = vunpack.c.l.b16 %v1525
    %v1616 = vunpack.c.h.b16 %v1525
    %v1617 = vunpack.c.l.b16 %v1526
    %v1618 = vunpack.c.h.b16 %v1526
    %v1619 = vunpack.c.l.b16 %v1527
    %v1620 = vunpack.c.h.b16 %v1527
    %v1621 = vunpack.c.l.b16 %v1528
    %v1622 = vunpack.c.h.b16 %v1528
    %v1623 = vunpack.c.l.b16 %v1529
    %v1624 = vunpack.c.h.b16 %v1529
    %v1625 = vunpack.c.l.b16 %v1530
    %v1626 = vunpack.c.h.b16 %v1530
    %v1627 = vunpack.c.l.b16 %v1531
    %v1628 = vunpack.c.h.b16 %v1531
    %v1629 = vunpack.c.l.b16 %v1532
    %v1630 = vunpack.c.h.b16 %v1532
    %v1631 = vunpack.c.l.b16 %v1533
    %v1632 = vunpack.c.h.b16 %v1533
    %v1633 = vunpack.c.l.b16 %v1534
    %v1634 = vunpack.c.h.b16 %v1534
    %v1635 = vunpack.c.l.b16 %v1535
    %v1636 = vunpack.c.h.b16 %v1535
    %v1637 = vunpack.c.l.b16 %v1536
    %v1638 = vunpack.c.h.b16 %v1536
    %v1639 = vpack.c.b16 %v1577, %v1575
    %v1640 = vpack.c.b16 %v1578, %v1576
    %v1641 = vpack.c.b16 %v1581, %v1579
    %v1642 = vpack.c.b16 %v1582, %v1580
    %v1643 = vpack.c.b16 %v1585, %v1583
    %v1644 = vpack.c.b16 %v1586, %v1584
    %v1645 = vpack.c.b16 %v1589, %v1587
    %v1646 = vpack.c.b16 %v1590, %v1588
    %v1647 = vpack.c.b16 %v1593, %v1591
    %v1648 = vpack.c.b16 %v1594, %v1592
    %v1649 = vpack.c.b16 %v1597, %v1595
    %v1650 = vpack.c.b16 %v1598, %v1596
    %v1651 = vpack.c.b16 %v1601, %v1599
    %v1652 = vpack.c.b16 %v1602, %v1600
    %v1653 = vpack.c.b16 %v1605, %v1603
    %v1654 = vpack.c.b16 %v1606, %v1604
    %v1655 = vpack.c.b16 %v1609, %v1607
    %v1656 = vpack.c.b16 %v1610, %v1608
    %v1657 = vpack.c.b16 %v1613, %v1611
    %v1658 = vpack.c.b16 %v1614, %v1612
    %v1659 = vpack.c.b16 %v1617, %v1615
    %v1660 = vpack.c.b16 %v1618, %v1616
    %v1661 = vpack.c.b16 %v1621, %v1619
    %v1662 = vpack.c.b16 %v1622, %v1620
    %v1663 = vpack.c.b16 %v1625, %v1623
    %v1664 = vpack.c.b16 %v1626, %v1624
    %v1665 = vpack.c.b16 %v1629, %v1627
    %v1666 = vpack.c.b16 %v1630, %v1628
    %v1667 = vpack.c.b16 %v1633, %v1631
    %v1668 = vpack.c.b16 %v1634, %v1632
    %v1669 = vpack.c.b16 %v1637, %v1635
    %v1670 = vpack.c.b16 %v1638, %v1636
    %1703 = vmatpush.bf16.msra.mxu0 %v1653
    %1704 = vmatpush.bf16.msra.mxu0 %v1651
    %1705 = vmatpush.bf16.msra.mxu0 %v1649
    %1706 = vmatpush.bf16.msra.mxu0 %v1647
    %1707 = vmatpush.bf16.msra.mxu0 %v1645
    %1708 = vmatpush.bf16.msra.mxu0 %v1643
    %1709 = vmatpush.bf16.msra.mxu0 %v1641
    %1710 = vmatpush.bf16.msra.mxu0 %v1639
    %1711 = vmatmul.bf16.gmra.mxu0 %v1503
    %v1712 = vpop.f32.mrf.mxu0
    %v1713 = vadd.f32 %v1539, %v1712
    %v1714 = vpop.f32.mrf.mxu0
    %1715 = vdwg.mxu0
    %1716 = vmatpush.bf16.msra.mxu0 %v1669
    %1717 = vmatpush.bf16.msra.mxu0 %v1667
    %1718 = vmatpush.bf16.msra.mxu0 %v1665
    %1719 = vmatpush.bf16.msra.mxu0 %v1663
    %1720 = vmatpush.bf16.msra.mxu0 %v1661
    %1721 = vmatpush.bf16.msra.mxu0 %v1659
    %1722 = vmatpush.bf16.msra.mxu0 %v1657
    %1723 = vmatpush.bf16.msra.mxu0 %v1655
    %1724 = vmatmul.bf16.gmra.mxu0 %v1504
    %v1725 = vpop.f32.mrf.mxu0
    %v1726 = vadd.f32 %v1713, %v1725
    %v1727 = vpop.f32.mrf.mxu0
    %1728 = vdwg.mxu0
    %1729 = vmatpush.bf16.msra.mxu0 %v1654
    %1730 = vmatpush.bf16.msra.mxu0 %v1652
    %1731 = vmatpush.bf16.msra.mxu0 %v1650
    %1732 = vmatpush.bf16.msra.mxu0 %v1648
    %1733 = vmatpush.bf16.msra.mxu0 %v1646
    %1734 = vmatpush.bf16.msra.mxu0 %v1644
    %1735 = vmatpush.bf16.msra.mxu0 %v1642
    %1736 = vmatpush.bf16.msra.mxu0 %v1640
    %1737 = vmatmul.bf16.gmra.mxu0 %v1503
    %v1738 = vpop.f32.mrf.mxu0
    %v1739 = vadd.f32 %v1540, %v1738
    %v1740 = vpop.f32.mrf.mxu0
    %1741 = vdwg.mxu0
    %1742 = vmatpush.bf16.msra.mxu0 %v1670
    %1743 = vmatpush.bf16.msra.mxu0 %v1668
    %1744 = vmatpush.bf16.msra.mxu0 %v1666
    %1745 = vmatpush.bf16.msra.mxu0 %v1664
    %1746 = vmatpush.bf16.msra.mxu0 %v1662
    %1747 = vmatpush.bf16.msra.mxu0 %v1660
    %1748 = vmatpush.bf16.msra.mxu0 %v1658
    %1749 = vmatpush.bf16.msra.mxu0 %v1656
    %1750 = vmatmul.bf16.gmra.mxu0 %v1504
    %v1751 = vpop.f32.mrf.mxu0
    %v1752 = vadd.f32 %v1739, %v1751
    %v1753 = vpop.f32.mrf.mxu0
    %1754 = vdwg.mxu0
    %v1755 = vmax.f32 %v1726, 0.0
    %v1756 = vmax.f32 %v1752, 0.0
    %v1757 = vld [vmem:[%s15] sm:$0x3]
    %v1759 = vperm.slane %v1757, 0
    %v1760 = vperm.slane %v1757, 1
    %v1763 = vmul.f32 %v1755, %v1759
    %v1764 = vmul.f32 %v1756, %v1760
    %v1765 = vadd.f32 %v1763, %v1764
    %1766 = vadd.xlane.f32.xlu0 %v1765
    %v1767 = vpop.xlane.xlu0 %1766
    %v1768 = vld [vmem:[#allocation2] sm:$0x1]
    %v1770 = vperm.slane %v1768, 0
    %v1772 = vadd.f32 %v1767, %v1770
    %1774 = vset.pattern.permute.xlu0 0
    %1775 = vperm.xlu0 %1774, %v1772
    %v1776 = vpop.permute.xlu0 %1775
    %1778 = vst [vmem:[#allocation18] sm:$0xff] %v1776
    // Predicated region
    $region106: #{tpu_custom_call.1} parent=1 // pred_check
      _
    $region107: #{tpu_custom_call.1} parent=1 // pred_check_branch
      %1780 = sbr.rel (0) target = $region109
    $region108: #{tpu_custom_call.1} parent=1 // pred_region
      %1782 = vsyncadd [#allocation5], 0
      %s1784 = sshll.u32 [#allocation18], 4
      %s1785 = int_to_ptr.vmem [resolvable:$true] %s1784
      %s1786 = sshll.u32 %s17, 4
      %s1787 = int_to_ptr.hbm [resolvable:$true] %s1786
      %1789 = dma.vmem_to_hbm [thread:$0]  %s1785, 128, %s1787, [#allocation5]
    $region109: #{tpu_custom_call.1} parent=1 // pred_fallthru
      _
    // Predicated region
    $region110: #{tpu_custom_call.1} parent=1 // pred_check
      _
    $region111: #{tpu_custom_call.1} parent=1 // pred_check_branch
      %1791 = sbr.rel (0) target = $region113
    $region112: #{tpu_custom_call.1} parent=1 // pred_region
      %1793 = dma.done [#allocation5], 128
    $region113: #{tpu_custom_call.1} parent=1 // pred_fallthru
      _
    %1794 = vsyncpa [#allocation4], 1
    %1795 = vsyncpa [#allocation7], 1
    %1796 = vsyncpa [#allocation10], 1
    %1797 = vsyncpa [#allocation13], 1
    %1798 = vsyncpa [#allocation16], 1
    %1799 = vsyncpa [#allocation5], 1

</llo_original>
